<compile_context>
chip_gen: v7x
topology: tpu7x:2x2x1
jax: 0.10.0
libtpu: 0.0.40
codegen_flags: <defaults>
</compile_context>

<pallas_src>
import functools
import math

import jax
import jax.numpy as jnp
from jax.experimental import pallas as pl
from jax.experimental.pallas import tpu as pltpu


def _round_up(x, m):
    return (x + m - 1) // m * m


def _pick_batch_tile(b):
    for tb in (512, 256, 128):
        if b % tb == 0:
            return tb
    return b


def _bn_tail(h1, mean, var, pvec, wslab_ref, s_pad, c, n_placing, out_ref):
    """BatchNorm affine + Linear(H,H)+ReLU + fused heads + masked sigmoid."""
    gamma = pvec[1:2, :]
    beta = pvec[2:3, :]
    b2 = pvec[3:4, :]
    bh = pvec[4:5, :]

    hn = (h1 - mean) * jax.lax.rsqrt(var + 1e-5)
    hn = hn * gamma + beta                                    # (TB, C) f32

    w2 = wslab_ref[s_pad:s_pad + c, :]                        # (C, C) bf16
    h2 = jnp.dot(hn.astype(jnp.bfloat16), w2,
                 preferred_element_type=jnp.float32) + b2
    h2 = jnp.maximum(h2, 0.0)

    wh = wslab_ref[s_pad + c:s_pad + 2 * c, :]                # (C, C) bf16
    y = jnp.dot(h2.astype(jnp.bfloat16), wh,
                preferred_element_type=jnp.float32) + bh

    cols = jax.lax.broadcasted_iota(jnp.int32, y.shape, 1)
    out_ref[...] = jnp.where(cols < n_placing, jax.nn.sigmoid(y), y)


def actor_train_kernel(state_ref, wslab_ref, pvec_ref, out_ref, stats_ref, *,
                       s_pad, c, n_placing, inv_batch):
    """Two-phase grid (phase, batch-tile).  Phase 0: batch-global BN stats.
    Phase 1: normalize + rest of the network."""
    phase = pl.program_id(0)
    tile = pl.program_id(1)

    pvec = pvec_ref[...]                                      # (8, C) f32
    b1 = pvec[0:1, :]
    w1 = wslab_ref[0:s_pad, :]                                # (S_pad, C) bf16

    # fc[0]: Linear(state, hidden) + ReLU (recomputed in both phases; tiny).
    h1 = jnp.dot(state_ref[...].astype(jnp.bfloat16), w1,
                 preferred_element_type=jnp.float32) + b1
    h1 = jnp.maximum(h1, 0.0)                                 # (TB, C) f32

    @pl.when(jnp.logical_and(phase == 0, tile == 0))
    def _():
        stats_ref[...] = jnp.zeros_like(stats_ref)

    @pl.when(phase == 0)
    def _():
        # Exact-f32 sublane reductions on the VPU/XLU path (no MXU FIFO).
        s1 = jnp.sum(h1, axis=0, keepdims=True)               # (1, C)
        s2 = jnp.sum(h1 * h1, axis=0, keepdims=True)          # (1, C)
        stats_ref[...] = stats_ref[...] + jnp.concatenate([s1, s2], axis=0)
        # Keep the phase-0 writeback of this output tile well-defined; the
        # phase-1 visit overwrites it with the real result.
        out_ref[...] = jnp.zeros_like(out_ref)

    @pl.when(phase == 1)
    def _():
        mean = stats_ref[0:1, :] * inv_batch
        var = jnp.maximum(stats_ref[1:2, :] * inv_batch - mean * mean, 0.0)
        _bn_tail(h1, mean, var, pvec, wslab_ref, s_pad, c, n_placing, out_ref)


def actor_eval_kernel(state_ref, wslab_ref, pvec_ref, out_ref, *,
                      s_pad, c, n_placing):
    """Single-phase, batch-parallel grid (tiles independent: running stats)."""
    pvec = pvec_ref[...]
    b1 = pvec[0:1, :]
    w1 = wslab_ref[0:s_pad, :]

    h1 = jnp.dot(state_ref[...].astype(jnp.bfloat16), w1,
                 preferred_element_type=jnp.float32) + b1
    h1 = jnp.maximum(h1, 0.0)

    mean = pvec[5:6, :]                                       # running_mean
    var = pvec[6:7, :]                                        # running_var
    _bn_tail(h1, mean, var, pvec, wslab_ref, s_pad, c, n_placing, out_ref)


@functools.partial(jax.jit,
                   static_argnames=("placing_dim", "routing_dim", "training"))
def actor_forward(state, params, placing_dim, routing_dim, training=True):
    """ActorNet forward.  Returns (placing, routing) matching the PyTorch net."""
    wslab, pvec = params
    C = wslab.shape[1]
    S_pad = wslab.shape[0] - 2 * C
    B, S = state.shape
    if S < S_pad:                      # zero-pad state lanes (zero w1 rows match)
        state = jnp.pad(state, ((0, 0), (0, S_pad - S)))

    P0, P1 = placing_dim
    R0, R1 = routing_dim
    n_placing = P0 * P1
    n_total = n_placing + R0 * R1

    TB = _pick_batch_tile(B)
    nt = B // TB

    if training:
        grid = (2, nt)
        in_specs = [
            pl.BlockSpec((TB, S_pad), lambda p, t: (t, 0)),
            pl.BlockSpec((S_pad + 2 * C, C), lambda p, t: (0, 0)),
            pl.BlockSpec((8, C), lambda p, t: (0, 0)),
        ]
        out_specs = pl.BlockSpec((TB, C), lambda p, t: (t, 0))
        scratch = [pltpu.VMEM((2, C), jnp.float32)]
        semantics = ("arbitrary", "arbitrary")   # batch-global stats need order
        kern = functools.partial(actor_train_kernel, s_pad=S_pad, c=C,
                                 n_placing=n_placing, inv_batch=1.0 / B)
    else:
        grid = (nt,)
        in_specs = [
            pl.BlockSpec((TB, S_pad), lambda t: (t, 0)),
            pl.BlockSpec((S_pad + 2 * C, C), lambda t: (0, 0)),
            pl.BlockSpec((8, C), lambda t: (0, 0)),
        ]
        out_specs = pl.BlockSpec((TB, C), lambda t: (t, 0))
        scratch = []
        semantics = ("parallel",)                # v7x: shard tiles across 2 TCs
        kern = functools.partial(actor_eval_kernel, s_pad=S_pad, c=C,
                                 n_placing=n_placing)

    out_flat = pl.pallas_call(
        kern,
        out_shape=jax.ShapeDtypeStruct((B, C), jnp.float32),
        grid_spec=pltpu.PrefetchScalarGridSpec(
            num_scalar_prefetch=0,
            grid=grid,
            in_specs=in_specs,
            out_specs=out_specs,
            scratch_shapes=scratch),
        compiler_params=pltpu.CompilerParams(
            dimension_semantics=semantics,
            vmem_limit_bytes=32 * 1024 * 1024),
    )(state, wslab, pvec)

    placing = out_flat[:, :n_placing].reshape(B, P0, P1)
    routing = out_flat[:, n_placing:n_total].reshape(B, R0, R1)
    return placing, routing


def init_params(key, state_dim, hidden_dim, placing_dim, routing_dim):
    """PyTorch-Linear-style init, packed into the kernel's fused lane-dense
    layout: one bf16 weight slab (S_pad + 2C, C) + one (8, C) f32 pvec."""
    P0, P1 = placing_dim
    R0, R1 = routing_dim
    n_total = P0 * P1 + R0 * R1
    C = max(_round_up(hidden_dim, 128), _round_up(n_total, 128))
    S_pad = _round_up(state_dim, 16)
    ks = jax.random.split(key, 8)

    def lin(kw, kb, fan_in, fan_out):
        bound = 1.0 / math.sqrt(float(fan_in))
        w = jax.random.uniform(kw, (fan_in, fan_out), jnp.float32, -bound, bound)
        b = jax.random.uniform(kb, (fan_out,), jnp.float32, -bound, bound)
        return w, b

    w1, b1 = lin(ks[0], ks[1], state_dim, hidden_dim)
    w2, b2 = lin(ks[2], ks[3], hidden_dim, hidden_dim)
    gamma = jnp.ones((hidden_dim,), jnp.float32)
    beta = jnp.zeros((hidden_dim,), jnp.float32)

    # Per-head weights built PyTorch-style, packed into one (hidden, n_total)
    # matrix: column i*out+j == head i, unit j.
    bound_h = 1.0 / math.sqrt(float(hidden_dim))
    wp = jax.random.uniform(ks[4], (P0, P1, hidden_dim), jnp.float32, -bound_h, bound_h)
    bp = jax.random.uniform(ks[5], (P0, P1), jnp.float32, -bound_h, bound_h)
    wr = jax.random.uniform(ks[6], (R0, R1, hidden_dim), jnp.float32, -bound_h, bound_h)
    br = jax.random.uniform(ks[7], (R0, R1), jnp.float32, -bound_h, bound_h)

    wp_flat = jnp.transpose(wp, (2, 0, 1)).reshape(hidden_dim, P0 * P1)
    wr_flat = jnp.transpose(wr, (2, 0, 1)).reshape(hidden_dim, R0 * R1)
    wh = jnp.concatenate([wp_flat, wr_flat], axis=1)
    bh = jnp.concatenate([bp.reshape(-1), br.reshape(-1)])

    # One lane-dense bf16 weight slab: rows [0,S_pad)=w1, [S_pad,S_pad+C)=w2,
    # [S_pad+C,S_pad+2C)=wh; all padding is exact zeros.
    w1_p = jnp.pad(w1, ((0, S_pad - state_dim), (0, C - hidden_dim)))
    w2_p = jnp.pad(w2, ((0, C - hidden_dim), (0, C - hidden_dim)))
    wh_p = jnp.pad(wh, ((0, C - hidden_dim), (0, C - n_total)))
    wslab = jnp.concatenate([w1_p, w2_p, wh_p], axis=0).astype(jnp.bfloat16)

    def row(v):
        return jnp.pad(v, (0, C - v.shape[0]))

    running_mean = jnp.zeros((hidden_dim,), jnp.float32)
    running_var = jnp.ones((hidden_dim,), jnp.float32)
    pvec = jnp.stack([
        row(b1), row(gamma), row(beta), row(b2), row(bh),
        row(running_mean), row(running_var), jnp.zeros((C,), jnp.float32),
    ], axis=0)                                                 # (8, C) f32

    return (wslab, pvec)


def reference_forward(state, params, placing_dim, routing_dim, training=True):
    """Pure-JAX reference mirroring the kernel's bf16-operand matmuls."""
    wslab, pvec = params
    C = wslab.shape[1]
    S_pad = wslab.shape[0] - 2 * C
    P0, P1 = placing_dim
    R0, R1 = routing_dim
    n_placing = P0 * P1
    n_total = n_placing + R0 * R1

    def mm(a, b):
        return jnp.dot(a.astype(jnp.bfloat16), b,
                       preferred_element_type=jnp.float32)

    x = state
    if x.shape[1] < S_pad:
        x = jnp.pad(x, ((0, 0), (0, S_pad - x.shape[1])))
    w1 = wslab[0:S_pad]
    w2 = wslab[S_pad:S_pad + C]
    wh = wslab[S_pad + C:S_pad + 2 * C]
    b1, gamma, beta, b2, bh, rmean, rvar = (pvec[i] for i in range(7))

    h = jnp.maximum(mm(x, w1) + b1, 0.0)
    if training:
        mean = jnp.mean(h, axis=0)
        var = jnp.mean((h - mean) ** 2, axis=0)
    else:
        mean, var = rmean, rvar
    h = (h - mean) * jax.lax.rsqrt(var + 1e-5) * gamma + beta
    h = jnp.maximum(mm(h, w2) + b2, 0.0)
    y = mm(h, wh) + bh

    placing = jax.nn.sigmoid(y[:, :n_placing]).reshape(-1, P0, P1)
    routing = y[:, n_placing:n_total].reshape(-1, R0, R1)
    return placing, routing


if __name__ == "__main__":
    key = jax.random.PRNGKey(0)

    # Large batch per call amortizes the fixed pallas_call / DMA-setup cost;
    # kernel tiles it into 256-row (full MXU height) blocks internally.
    B = 1024
    state_dim = 16
    hidden_dim = 32
    placing_dim = (4, 6)   # (n_placing_heads, placing head width)
    routing_dim = (3, 5)   # (n_routing_heads, routing head width)

    k_param, k_state = jax.random.split(key)
    params = init_params(k_param, state_dim, hidden_dim, placing_dim, routing_dim)
    state = jax.random.normal(k_state, (B, state_dim), jnp.float32)

    # Training-mode path (batch-global BatchNorm statistics, two-phase grid).
    placing, routing = actor_forward(state, params, placing_dim, routing_dim,
                                     training=True)
    placing, routing = jax.block_until_ready((placing, routing))
    assert placing.shape == (B,) + placing_dim, placing.shape
    assert routing.shape == (B,) + routing_dim, routing.shape
    assert bool(jnp.all((placing >= 0.0) & (placing <= 1.0)))
    assert bool(jnp.all(jnp.isfinite(routing)))
    ref_p, ref_r = reference_forward(state, params, placing_dim, routing_dim,
                                     training=True)
    assert bool(jnp.allclose(placing, ref_p, atol=2e-2, rtol=2e-2))
    assert bool(jnp.allclose(routing, ref_r, atol=2e-2, rtol=2e-2))

    # Inference-mode path (running stats; batch-parallel grid for v7x 2 TCs).
    placing_e, routing_e = actor_forward(state, params, placing_dim, routing_dim,
                                         training=False)
    placing_e, routing_e = jax.block_until_ready((placing_e, routing_e))
    ref_pe, ref_re = reference_forward(state, params, placing_dim, routing_dim,
                                       training=False)
    assert bool(jnp.allclose(placing_e, ref_pe, atol=2e-2, rtol=2e-2))
    assert bool(jnp.allclose(routing_e, ref_re, atol=2e-2, rtol=2e-2))

    print("KERNEL_OK")
</pallas_src>

<mosaic_0001>
module attributes {stable_mosaic.version = 11 : i64} {
  func.func @actor_train_kernel(%arg0: i32, %arg1: i32, %arg2: memref<512x16xf32, #tpu.memory_space<vmem>>, %arg3: memref<272x128xbf16, #tpu.memory_space<vmem>>, %arg4: memref<8x128xf32, #tpu.memory_space<vmem>>, %arg5: memref<512x128xf32, #tpu.memory_space<vmem>>, %arg6: memref<2x128xf32, #tpu.memory_space<vmem>>) attributes {dimension_semantics = [#tpu.dimension_semantics<arbitrary>, #tpu.dimension_semantics<arbitrary>], iteration_bounds = array<i64: 2, 2>, scalar_prefetch = 0 : i64, scratch_operands = 1 : i64, tpu.core_type = #tpu.core_type<tc>, window_params = [{transform_indices = @transform_0, window_bounds = array<i64: 512, 16>}, {pipeline_mode = #tpu.pipeline_mode<synchronous>, transform_indices = @transform_1, window_bounds = array<i64: 272, 128>}, {pipeline_mode = #tpu.pipeline_mode<synchronous>, transform_indices = @transform_2, window_bounds = array<i64: 8, 128>}, {transform_indices = @transform_3, window_bounds = array<i64: 512, 128>}]} {
    %c0 = arith.constant 0 : index
    %c0_0 = arith.constant 0 : index
    %0 = vector.load %arg4[%c0, %c0_0] : memref<8x128xf32, #tpu.memory_space<vmem>>, vector<8x128xf32>
    %1 = vector.extract_strided_slice %0 {offsets = [0, 0], sizes = [1, 128], strides = [1, 1]} : vector<8x128xf32> to vector<1x128xf32>
    %c0_1 = arith.constant 0 : index
    %c0_2 = arith.constant 0 : index
    %2 = vector.load %arg3[%c0_1, %c0_2] : memref<272x128xbf16, #tpu.memory_space<vmem>>, vector<16x128xbf16>
    %c0_3 = arith.constant 0 : index
    %c0_4 = arith.constant 0 : index
    %3 = vector.load %arg2[%c0_3, %c0_4] : memref<512x16xf32, #tpu.memory_space<vmem>>, vector<512x16xf32>
    %4 = arith.truncf %3 : vector<512x16xf32> to vector<512x16xbf16>
    %cst = arith.constant dense<0.000000e+00> : vector<512x128xf32>
    %5 = tpu.matmul %4, %2, %cst {dimension_numbers = #tpu.dot_dimension_numbers<[1], [0], [0], [1], [0, 0, 1, 1], [], []>} : vector<512x16xbf16>, vector<16x128xbf16>, vector<512x128xf32> -> vector<512x128xf32>
    %6 = vector.broadcast %1 : vector<1x128xf32> to vector<512x128xf32>
    %7 = arith.addf %5, %6 : vector<512x128xf32>
    %cst_5 = arith.constant 0.000000e+00 : f32
    %8 = vector.broadcast %cst_5 : f32 to vector<512x128xf32>
    %9 = arith.maximumf %7, %8 : vector<512x128xf32>
    %c0_i32 = arith.constant 0 : i32
    %10 = arith.cmpi eq, %arg0, %c0_i32 : i32
    %c0_i32_6 = arith.constant 0 : i32
    %11 = arith.cmpi eq, %arg1, %c0_i32_6 : i32
    %12 = arith.andi %10, %11 : i1
    %13 = arith.extui %12 : i1 to i32
    %c0_i32_7 = arith.constant 0 : i32
    %14 = arith.cmpi ne, %13, %c0_i32_7 : i32
    scf.if %14 {
      %cst_11 = arith.constant 0.000000e+00 : f32
      %21 = vector.broadcast %cst_11 : f32 to vector<2x128xf32>
      %c0_12 = arith.constant 0 : index
      %c0_13 = arith.constant 0 : index
      %22 = vector.load %arg6[%c0_12, %c0_13] : memref<2x128xf32, #tpu.memory_space<vmem>>, vector<2x128xf32>
      tpu.vector_store %arg6[%c0_12, %c0_13], %21 {strides = array<i32>} : memref<2x128xf32, #tpu.memory_space<vmem>>, vector<2x128xf32>,
    } else {
    }
    %c0_i32_8 = arith.constant 0 : i32
    %15 = arith.cmpi eq, %arg0, %c0_i32_8 : i32
    %16 = arith.extui %15 : i1 to i32
    %c0_i32_9 = arith.constant 0 : i32
    %17 = arith.cmpi ne, %16, %c0_i32_9 : i32
    scf.if %17 {
      %cst_11 = arith.constant dense<0.000000e+00> : vector<128xf32>
      %21 = vector.multi_reduction <add>, %9, %cst_11 [0] : vector<512x128xf32> to vector<128xf32>
      %22 = vector.shape_cast %21 : vector<128xf32> to vector<1x128xf32>
      %23 = arith.mulf %9, %9 : vector<512x128xf32>
      %cst_12 = arith.constant dense<0.000000e+00> : vector<128xf32>
      %24 = vector.multi_reduction <add>, %23, %cst_12 [0] : vector<512x128xf32> to vector<128xf32>
      %25 = vector.shape_cast %24 : vector<128xf32> to vector<1x128xf32>
      %c0_13 = arith.constant 0 : index
      %c0_14 = arith.constant 0 : index
      %26 = vector.load %arg6[%c0_13, %c0_14] : memref<2x128xf32, #tpu.memory_space<vmem>>, vector<2x128xf32>
      %27 = tpu.concatenate %22, %25 in 0 : vector<1x128xf32>, vector<1x128xf32> -> vector<2x128xf32>
      %28 = arith.addf %26, %27 : vector<2x128xf32>
      %c0_15 = arith.constant 0 : index
      %c0_16 = arith.constant 0 : index
      %29 = vector.load %arg6[%c0_15, %c0_16] : memref<2x128xf32, #tpu.memory_space<vmem>>, vector<2x128xf32>
      tpu.vector_store %arg6[%c0_15, %c0_16], %28 {strides = array<i32>} : memref<2x128xf32, #tpu.memory_space<vmem>>, vector<2x128xf32>,
      %cst_17 = arith.constant 0.000000e+00 : f32
      %30 = vector.broadcast %cst_17 : f32 to vector<512x128xf32>
      %c0_18 = arith.constant 0 : index
      %c0_19 = arith.constant 0 : index
      %31 = vector.load %arg5[%c0_18, %c0_19] : memref<512x128xf32, #tpu.memory_space<vmem>>, vector<512x128xf32>
      tpu.vector_store %arg5[%c0_18, %c0_19], %30 {strides = array<i32>} : memref<512x128xf32, #tpu.memory_space<vmem>>, vector<512x128xf32>,
    } else {
    }
    %c1_i32 = arith.constant 1 : i32
    %18 = arith.cmpi eq, %arg0, %c1_i32 : i32
    %19 = arith.extui %18 : i1 to i32
    %c0_i32_10 = arith.constant 0 : i32
    %20 = arith.cmpi ne, %19, %c0_i32_10 : i32
    scf.if %20 {
      %c0_11 = arith.constant 0 : index
      %c0_12 = arith.constant 0 : index
      %21 = vector.load %arg6[%c0_11, %c0_12] : memref<2x128xf32, #tpu.memory_space<vmem>>, vector<1x128xf32>
      %cst_13 = arith.constant 9.765625E-4 : f32
      %22 = vector.broadcast %cst_13 : f32 to vector<1x128xf32>
      %23 = arith.mulf %21, %22 : vector<1x128xf32>
      %c1 = arith.constant 1 : index
      %c0_14 = arith.constant 0 : index
      %24 = vector.load %arg6[%c1, %c0_14] : memref<2x128xf32, #tpu.memory_space<vmem>>, vector<1x128xf32>
      %cst_15 = arith.constant 9.765625E-4 : f32
      %25 = vector.broadcast %cst_15 : f32 to vector<1x128xf32>
      %26 = arith.mulf %24, %25 : vector<1x128xf32>
      %27 = arith.mulf %23, %23 : vector<1x128xf32>
      %28 = arith.subf %26, %27 : vector<1x128xf32>
      %cst_16 = arith.constant 0.000000e+00 : f32
      %29 = vector.broadcast %cst_16 : f32 to vector<1x128xf32>
      %30 = arith.maximumf %28, %29 : vector<1x128xf32>
      %31 = vector.extract_strided_slice %0 {offsets = [1, 0], sizes = [1, 128], strides = [1, 1]} : vector<8x128xf32> to vector<1x128xf32>
      %32 = vector.extract_strided_slice %0 {offsets = [2, 0], sizes = [1, 128], strides = [1, 1]} : vector<8x128xf32> to vector<1x128xf32>
      %33 = vector.extract_strided_slice %0 {offsets = [3, 0], sizes = [1, 128], strides = [1, 1]} : vector<8x128xf32> to vector<1x128xf32>
      %34 = vector.extract_strided_slice %0 {offsets = [4, 0], sizes = [1, 128], strides = [1, 1]} : vector<8x128xf32> to vector<1x128xf32>
      %35 = vector.broadcast %23 : vector<1x128xf32> to vector<512x128xf32>
      %36 = arith.subf %9, %35 : vector<512x128xf32>
      %cst_17 = arith.constant 9.99999974E-6 : f32
      %37 = vector.broadcast %cst_17 : f32 to vector<1x128xf32>
      %38 = arith.addf %30, %37 : vector<1x128xf32>
      %39 = math.rsqrt %38 : vector<1x128xf32>
      %40 = vector.broadcast %39 : vector<1x128xf32> to vector<512x128xf32>
      %41 = arith.mulf %36, %40 : vector<512x128xf32>
      %42 = vector.broadcast %31 : vector<1x128xf32> to vector<512x128xf32>
      %43 = arith.mulf %41, %42 : vector<512x128xf32>
      %44 = vector.broadcast %32 : vector<1x128xf32> to vector<512x128xf32>
      %45 = arith.addf %43, %44 : vector<512x128xf32>
      %c16 = arith.constant 16 : index
      %c0_18 = arith.constant 0 : index
      %46 = vector.load %arg3[%c16, %c0_18] : memref<272x128xbf16, #tpu.memory_space<vmem>>, vector<128x128xbf16>
      %47 = arith.truncf %45 : vector<512x128xf32> to vector<512x128xbf16>
      %cst_19 = arith.constant dense<0.000000e+00> : vector<512x128xf32>
      %48 = tpu.matmul %47, %46, %cst_19 {dimension_numbers = #tpu.dot_dimension_numbers<[1], [0], [0], [1], [0, 0, 1, 1], [], []>} : vector<512x128xbf16>, vector<128x128xbf16>, vector<512x128xf32> -> vector<512x128xf32>
      %49 = vector.broadcast %33 : vector<1x128xf32> to vector<512x128xf32>
      %50 = arith.addf %48, %49 : vector<512x128xf32>
      %cst_20 = arith.constant 0.000000e+00 : f32
      %51 = vector.broadcast %cst_20 : f32 to vector<512x128xf32>
      %52 = arith.maximumf %50, %51 : vector<512x128xf32>
      %c144 = arith.constant 144 : index
      %c0_21 = arith.constant 0 : index
      %53 = vector.load %arg3[%c144, %c0_21] : memref<272x128xbf16, #tpu.memory_space<vmem>>, vector<128x128xbf16>
      %54 = arith.truncf %52 : vector<512x128xf32> to vector<512x128xbf16>
      %cst_22 = arith.constant dense<0.000000e+00> : vector<512x128xf32>
      %55 = tpu.matmul %54, %53, %cst_22 {dimension_numbers = #tpu.dot_dimension_numbers<[1], [0], [0], [1], [0, 0, 1, 1], [], []>} : vector<512x128xbf16>, vector<128x128xbf16>, vector<512x128xf32> -> vector<512x128xf32>
      %56 = vector.broadcast %34 : vector<1x128xf32> to vector<512x128xf32>
      %57 = arith.addf %55, %56 : vector<512x128xf32>
      %58 = tpu.iota {dimensions = array<i32: 1>} : vector<512x128xi32>
      %c24_i32 = arith.constant 24 : i32
      %59 = vector.broadcast %c24_i32 : i32 to vector<512x128xi32>
      %60 = arith.cmpi slt, %58, %59 : vector<512x128xi32>
      %61 = arith.negf %57 : vector<512x128xf32>
      %62 = math.exp %61 : vector<512x128xf32>
      %cst_23 = arith.constant 1.000000e+00 : f32
      %63 = vector.broadcast %cst_23 : f32 to vector<512x128xf32>
      %64 = arith.addf %63, %62 : vector<512x128xf32>
      %65 = arith.divf %63, %64 : vector<512x128xf32>
      %66 = arith.select %60, %65, %57 : vector<512x128xi1>, vector<512x128xf32>
      %c0_24 = arith.constant 0 : index
      %c0_25 = arith.constant 0 : index
      %67 = vector.load %arg5[%c0_24, %c0_25] : memref<512x128xf32, #tpu.memory_space<vmem>>, vector<512x128xf32>
      tpu.vector_store %arg5[%c0_24, %c0_25], %66 {strides = array<i32>} : memref<512x128xf32, #tpu.memory_space<vmem>>, vector<512x128xf32>,
    } else {
    }
    return
  }
  func.func @transform_0(%arg0: i32, %arg1: i32) -> (i32, i32) {
    %c0_i32 = arith.constant 0 : i32
    %c0_i32_0 = arith.constant 0 : i32
    return %arg1, %c0_i32 : i32, i32
  }
  func.func @transform_1(%arg0: i32, %arg1: i32) -> (i32, i32) {
    %c0_i32 = arith.constant 0 : i32
    %c0_i32_0 = arith.constant 0 : i32
    %c0_i32_1 = arith.constant 0 : i32
    return %c0_i32, %c0_i32_0 : i32, i32
  }
  func.func @transform_2(%arg0: i32, %arg1: i32) -> (i32, i32) {
    %c0_i32 = arith.constant 0 : i32
    %c0_i32_0 = arith.constant 0 : i32
    %c0_i32_1 = arith.constant 0 : i32
    return %c0_i32, %c0_i32_0 : i32, i32
  }
  func.func @transform_3(%arg0: i32, %arg1: i32) -> (i32, i32) {
    %c0_i32 = arith.constant 0 : i32
    %c0_i32_0 = arith.constant 0 : i32
    return %arg1, %c0_i32 : i32, i32
  }
}

</mosaic_0001>

<llo_original>
// kernel: actor_forward.1
$region0: #{actor_forward.1}
  #allocation0 [shape = 'u32[]', space=smem, size = 0x4, offset = 0x4, fixed_abs, tag = 'smem constant byte address 0x4 - core index']
  #allocation1 [shape = 'u32[144,128]{1,0:T(1,128)}', space=vmem, size = 0x12000, scoped, tag = 'internal scratch']
  #allocation2 [shape = 'f32[2,128]{1,0:T(2,128)}', space=vmem, size = 0x400, scoped, tag = 'scratch operand']
  %s0 = inlined_call_operand.vmem [shape: f32[1024,16], index: 0, kind: input, shape index: {}]
  %s1 = inlined_call_operand.vmem [shape: bf16[272,128], index: 1, kind: input, shape index: {}]
  %s2 = inlined_call_operand.vmem [shape: f32[8,128], index: 2, kind: input, shape index: {}]
  %s3 = inlined_call_operand.vmem [shape: f32[1024,128], index: 3, kind: output, shape index: {}]
  %s4 = sld [smem:[#allocation0]]
  $region57: #{actor_forward.1} parent=0
    _
  %s6 = ssub.s32 1, %s4
  %s7 = scalar_select 0, %s6, %s4
  loop: start=0, step=1, limit=6
  $region2: #{actor_forward.1} parent=0 // loop_pre_header
    _
  $region3: #{actor_forward.1} parent=0 // loop_header
    %s9 = sphi 0, %s13
    %p10 = scmp.ge.s32.totalorder %s9, 6
    %s16 = sphi 0, %s28
    %s17 = sphi 0, %s24
    %s18 = sphi 0, %s16
    %s19 = sphi 0, %s17
    %s20 = sphi 0, %s18
    %s21 = sphi 0, %s19
    %s31 = sphi 0, %s33
    %s34 = sphi 0, %s31
    %s35 = sphi 0, %s34
    %s51 = sphi 0, %s35
    %s55 = sphi 0, %s55
    %s57 = sphi 0, %s55
    %s58 = sphi 0, %s57
    %s72 = sphi 0, %s58
    %s76 = sphi 0, %s76
    %s78 = sphi 0, %s76
    %s79 = sphi 0, %s78
    %s93 = sphi 0, %s79
    %s99 = sphi 0, %s101
    %s102 = sphi 0, %s99
    %s103 = sphi 0, %s102
    %s119 = sphi 0, %s103
  $region4: #{actor_forward.1} parent=0 // loop_header_branch
    %12 = sbr.rel (%p10) target = $region8
  $region5: #{actor_forward.1} parent=0 // loop_body
    %s14 = ssub.s32 %s9, 1
    %s15 = ssub.s32 %s9, 2
    %s22 = sadd.s32 1, %s17
    %p23 = scmp.ge.s32.totalorder %s22, 2
    %s24 = scalar_select %p23, 0, %s22
    %s25 = sadd.s32 1, %s16
    %s26 = scalar_select %p23, %s25, %s16
    %p27 = scmp.ge.s32.totalorder %s26, 2
    %s28 = scalar_select %p27, 0, %s26
    %s29 = ssub.s32 %s17, %s24
    %p30 = scmp.eq.s32.totalorder %s29, 0
    %s32 = sadd.s32 %s31, 1
    %s33 = scalar_select %p30, %s31, %s32
    %p36 = pneg %p30
    %p37 = scmp.eq.s32.totalorder %s9, 3
    %p38 = por %p36, %p37
    %p39 = scmp.ne.s32.totalorder %s31, %s34
    %p40 = scmp.eq.s32.totalorder %s9, 0
    %p41 = por %p39, %p40
    %p42 = scmp.ne.s32.totalorder %s31, %s34
    %p43 = scmp.eq.s32.totalorder %s14, 3
    %p44 = por %p42, %p43
    %p45 = scmp.ne.s32.totalorder %s34, %s35
    %p46 = scmp.eq.s32.totalorder %s14, 0
    %p47 = por %p45, %p46
    %p48 = scmp.ne.s32.totalorder %s34, %s35
    %p49 = scmp.eq.s32.totalorder %s15, 3
    %p50 = por %p48, %p49
    %p52 = scmp.ne.s32.totalorder %s35, %s51
    %p53 = scmp.eq.s32.totalorder %s15, 0
    %p54 = por %p52, %p53
    %s56 = sadd.s32 %s55, 1
    %p59 = scmp.eq.s32.totalorder %s9, 3
    %p60 = scmp.ne.s32.totalorder %s55, %s57
    %p61 = scmp.eq.s32.totalorder %s9, 0
    %p62 = por %p60, %p61
    %p63 = scmp.ne.s32.totalorder %s55, %s57
    %p64 = scmp.eq.s32.totalorder %s14, 3
    %p65 = por %p63, %p64
    %p66 = scmp.ne.s32.totalorder %s57, %s58
    %p67 = scmp.eq.s32.totalorder %s14, 0
    %p68 = por %p66, %p67
    %p69 = scmp.ne.s32.totalorder %s57, %s58
    %p70 = scmp.eq.s32.totalorder %s15, 3
    %p71 = por %p69, %p70
    %p73 = scmp.ne.s32.totalorder %s58, %s72
    %p74 = scmp.eq.s32.totalorder %s15, 0
    %p75 = por %p73, %p74
    %s77 = sadd.s32 %s76, 1
    %p80 = scmp.eq.s32.totalorder %s9, 3
    %p81 = scmp.ne.s32.totalorder %s76, %s78
    %p82 = scmp.eq.s32.totalorder %s9, 0
    %p83 = por %p81, %p82
    %p84 = scmp.ne.s32.totalorder %s76, %s78
    %p85 = scmp.eq.s32.totalorder %s14, 3
    %p86 = por %p84, %p85
    %p87 = scmp.ne.s32.totalorder %s78, %s79
    %p88 = scmp.eq.s32.totalorder %s14, 0
    %p89 = por %p87, %p88
    %p90 = scmp.ne.s32.totalorder %s78, %s79
    %p91 = scmp.eq.s32.totalorder %s15, 3
    %p92 = por %p90, %p91
    %p94 = scmp.ne.s32.totalorder %s79, %s93
    %p95 = scmp.eq.s32.totalorder %s15, 0
    %p96 = por %p94, %p95
    %s97 = ssub.s32 %s17, %s24
    %p98 = scmp.eq.s32.totalorder %s97, 0
    %s100 = sadd.s32 %s99, 1
    %s101 = scalar_select %p98, %s99, %s100
    %p104 = pneg %p98
    %p105 = scmp.eq.s32.totalorder %s9, 3
    %p106 = por %p104, %p105
    %p107 = scmp.ne.s32.totalorder %s99, %s102
    %p108 = scmp.eq.s32.totalorder %s9, 0
    %p109 = por %p107, %p108
    %p110 = scmp.ne.s32.totalorder %s99, %s102
    %p111 = scmp.eq.s32.totalorder %s14, 3
    %p112 = por %p110, %p111
    %p113 = scmp.ne.s32.totalorder %s102, %s103
    %p114 = scmp.eq.s32.totalorder %s14, 0
    %p115 = por %p113, %p114
    %p116 = scmp.ne.s32.totalorder %s102, %s103
    %p117 = scmp.eq.s32.totalorder %s15, 3
    %p118 = por %p116, %p117
    %p120 = scmp.ne.s32.totalorder %s103, %s119
    %p121 = scmp.eq.s32.totalorder %s15, 0
    %p122 = por %p120, %p121
    %p123 = scmp.le.s32.totalorder 1, %s9
    %p124 = scmp.lt.s32.totalorder %s9, 5
    %p125 = pnand %p123, %p124
    %p126 = pneg %p125
    // Predicated region
    $region9: #{actor_forward.1} parent=5 // pred_check
      _
    $region10: #{actor_forward.1} parent=5 // pred_check_branch
      %128 = sbr.rel (%p125) target = $region12
    $region11: #{actor_forward.1} parent=5 // pred_region
      %s129 = ssub.s32 %s9, 1
      // Predicated region
      $region13: #{actor_forward.1} parent=11 // pred_check
        %p130 = pneg %p68
      $region14: #{actor_forward.1} parent=11 // pred_check_branch
        %132 = sbr.rel (%p130) target = $region16
      $region15: #{actor_forward.1} parent=11 // pred_region
        _
      $region16: #{actor_forward.1} parent=11 // pred_fallthru
        _
      // Predicated region
      $region17: #{actor_forward.1} parent=11 // pred_check
        %p133 = pneg %p89
      $region18: #{actor_forward.1} parent=11 // pred_check_branch
        %135 = sbr.rel (%p133) target = $region20
      $region19: #{actor_forward.1} parent=11 // pred_region
        _
      $region20: #{actor_forward.1} parent=11 // pred_fallthru
        _
    $region12: #{actor_forward.1} parent=5 // pred_fallthru
      _
    %p136 = scmp.lt.s32.totalorder %s9, 4
    // Predicated region
    $region21: #{actor_forward.1} parent=5 // pred_check
      %p137 = pneg %p136
    $region22: #{actor_forward.1} parent=5 // pred_check_branch
      %139 = sbr.rel (%p137) target = $region24
    $region23: #{actor_forward.1} parent=5 // pred_region
      // Predicated region
      $region25: #{actor_forward.1} parent=23 // pred_check
        %p140 = pneg %p41
      $region26: #{actor_forward.1} parent=23 // pred_check_branch
        %142 = sbr.rel (%p140) target = $region28
      $region27: #{actor_forward.1} parent=23 // pred_region
        %s143 = smul.u32 64, %s17
        %p144 = scmp.lt.s32.totalorder %s143, 127
        %s145 = scalar_select %p144, %s143, 127
        %s146 = smul.addr %s145, 8
        %s147 = scalar_lea.vmem %s0, %s146
        %s148 = smul.u32 64, %s17
      $region28: #{actor_forward.1} parent=23 // pred_fallthru
        _
    $region24: #{actor_forward.1} parent=5 // pred_fallthru
      _
    %p149 = scmp.le.s32.totalorder 1, %s9
    %p150 = scmp.lt.s32.totalorder %s9, 5
    %p151 = pnand %p149, %p150
    %p152 = pneg %p151
    // Predicated region
    $region29: #{actor_forward.1} parent=5 // pred_check
      _
    $region30: #{actor_forward.1} parent=5 // pred_check_branch
      %154 = sbr.rel (%p151) target = $region32
    $region31: #{actor_forward.1} parent=5 // pred_region
      %s155 = ssub.s32 %s9, 1
      %s156 = smul.u32 64, %s19
      %p157 = scmp.lt.s32.totalorder %s156, 127
      %s158 = scalar_select %p157, %s156, 127
      %s159 = smul.addr %s158, 8
      %s160 = scalar_lea.vmem %s0, %s159
      %p161 = pneg %p47
      %p162 = pneg %p44
      %p163 = pneg %p68
      %p164 = pneg %p65
      %p165 = pneg %p89
      %p166 = pneg %p86
      %p167 = pneg %p115
      %p168 = pneg %p112
      %s169 = smul.u32 64, %s19
      %p170 = scmp.lt.s32.totalorder %s169, 127
      %s171 = scalar_select %p170, %s169, 127
      %s172 = smul.addr %s171, 8
      %s173 = scalar_lea.vmem %s3, %s172
      %s174 = smul.u32 64, %s19
      %p175 = scmp.lt.s32.totalorder %s174, 127
      %s176 = scalar_select %p175, %s174, 127
      %s177 = smul.addr %s176, 8
      %s178 = scalar_lea.vmem %s0, %s177
      %s179 = smul.u32 64, %s19
      %s180 = smul.u32 64, %s19
      %p181 = scmp.lt.s32.totalorder %s180, 127
      %s182 = scalar_select %p181, %s180, 127
      %s183 = smul.addr %s182, 8
      %s184 = scalar_lea.vmem %s3, %s183
      %s185 = smul.u32 64, %s19
      %v187 = vld [vmem:[%s2] sm:$0xff]
      %v188 = vld [vmem:[%s1] sm:$0xf]
      %v189 = vld [vmem:[%s1 + $0x4] sm:$0xf]
      %v190 = vld [vmem:[%s178] sm:$0xff]
      %v191 = vld [vmem:[%s178 + $0x8] sm:$0xff]
      %v192 = vld [vmem:[%s178 + $0x10] sm:$0xff]
      %v193 = vld [vmem:[%s178 + $0x18] sm:$0xff]
      %v194 = vld [vmem:[%s178 + $0x20] sm:$0xff]
      %v195 = vld [vmem:[%s178 + $0x28] sm:$0xff]
      %v196 = vld [vmem:[%s178 + $0x30] sm:$0xff]
      %v197 = vld [vmem:[%s178 + $0x38] sm:$0xff]
      %v198 = vld [vmem:[%s178 + $0x40] sm:$0xff]
      %v199 = vld [vmem:[%s178 + $0x48] sm:$0xff]
      %v200 = vld [vmem:[%s178 + $0x50] sm:$0xff]
      %v201 = vld [vmem:[%s178 + $0x58] sm:$0xff]
      %v202 = vld [vmem:[%s178 + $0x60] sm:$0xff]
      %v203 = vld [vmem:[%s178 + $0x68] sm:$0xff]
      %v204 = vld [vmem:[%s178 + $0x70] sm:$0xff]
      %v205 = vld [vmem:[%s178 + $0x78] sm:$0xff]
      %v206 = vld [vmem:[%s178 + $0x80] sm:$0xff]
      %v207 = vld [vmem:[%s178 + $0x88] sm:$0xff]
      %v208 = vld [vmem:[%s178 + $0x90] sm:$0xff]
      %v209 = vld [vmem:[%s178 + $0x98] sm:$0xff]
      %v210 = vld [vmem:[%s178 + $0xa0] sm:$0xff]
      %v211 = vld [vmem:[%s178 + $0xa8] sm:$0xff]
      %v212 = vld [vmem:[%s178 + $0xb0] sm:$0xff]
      %v213 = vld [vmem:[%s178 + $0xb8] sm:$0xff]
      %v214 = vld [vmem:[%s178 + $0xc0] sm:$0xff]
      %v215 = vld [vmem:[%s178 + $0xc8] sm:$0xff]
      %v216 = vld [vmem:[%s178 + $0xd0] sm:$0xff]
      %v217 = vld [vmem:[%s178 + $0xd8] sm:$0xff]
      %v218 = vld [vmem:[%s178 + $0xe0] sm:$0xff]
      %v219 = vld [vmem:[%s178 + $0xe8] sm:$0xff]
      %v220 = vld [vmem:[%s178 + $0xf0] sm:$0xff]
      %v221 = vld [vmem:[%s178 + $0xf8] sm:$0xff]
      %v222 = vld [vmem:[%s178 + $0x100] sm:$0xff]
      %v223 = vld [vmem:[%s178 + $0x108] sm:$0xff]
      %v224 = vld [vmem:[%s178 + $0x110] sm:$0xff]
      %v225 = vld [vmem:[%s178 + $0x118] sm:$0xff]
      %v226 = vld [vmem:[%s178 + $0x120] sm:$0xff]
      %v227 = vld [vmem:[%s178 + $0x128] sm:$0xff]
      %v228 = vld [vmem:[%s178 + $0x130] sm:$0xff]
      %v229 = vld [vmem:[%s178 + $0x138] sm:$0xff]
      %v230 = vld [vmem:[%s178 + $0x140] sm:$0xff]
      %v231 = vld [vmem:[%s178 + $0x148] sm:$0xff]
      %v232 = vld [vmem:[%s178 + $0x150] sm:$0xff]
      %v233 = vld [vmem:[%s178 + $0x158] sm:$0xff]
      %v234 = vld [vmem:[%s178 + $0x160] sm:$0xff]
      %v235 = vld [vmem:[%s178 + $0x168] sm:$0xff]
      %v236 = vld [vmem:[%s178 + $0x170] sm:$0xff]
      %v237 = vld [vmem:[%s178 + $0x178] sm:$0xff]
      %v238 = vld [vmem:[%s178 + $0x180] sm:$0xff]
      %v239 = vld [vmem:[%s178 + $0x188] sm:$0xff]
      %v240 = vld [vmem:[%s178 + $0x190] sm:$0xff]
      %v241 = vld [vmem:[%s178 + $0x198] sm:$0xff]
      %v242 = vld [vmem:[%s178 + $0x1a0] sm:$0xff]
      %v243 = vld [vmem:[%s178 + $0x1a8] sm:$0xff]
      %v244 = vld [vmem:[%s178 + $0x1b0] sm:$0xff]
      %v245 = vld [vmem:[%s178 + $0x1b8] sm:$0xff]
      %v246 = vld [vmem:[%s178 + $0x1c0] sm:$0xff]
      %v247 = vld [vmem:[%s178 + $0x1c8] sm:$0xff]
      %v248 = vld [vmem:[%s178 + $0x1d0] sm:$0xff]
      %v249 = vld [vmem:[%s178 + $0x1d8] sm:$0xff]
      %v250 = vld [vmem:[%s178 + $0x1e0] sm:$0xff]
      %v251 = vld [vmem:[%s178 + $0x1e8] sm:$0xff]
      %v252 = vld [vmem:[%s178 + $0x1f0] sm:$0xff]
      %v253 = vld [vmem:[%s178 + $0x1f8] sm:$0xff]
      %v254 = vpack.c.bf16 %v191, %v190
      %v255 = vpack.c.bf16 %v193, %v192
      %v256 = vpack.c.bf16 %v195, %v194
      %v257 = vpack.c.bf16 %v197, %v196
      %v258 = vpack.c.bf16 %v199, %v198
      %v259 = vpack.c.bf16 %v201, %v200
      %v260 = vpack.c.bf16 %v203, %v202
      %v261 = vpack.c.bf16 %v205, %v204
      %v262 = vpack.c.bf16 %v207, %v206
      %v263 = vpack.c.bf16 %v209, %v208
      %v264 = vpack.c.bf16 %v211, %v210
      %v265 = vpack.c.bf16 %v213, %v212
      %v266 = vpack.c.bf16 %v215, %v214
      %v267 = vpack.c.bf16 %v217, %v216
      %v268 = vpack.c.bf16 %v219, %v218
      %v269 = vpack.c.bf16 %v221, %v220
      %v270 = vpack.c.bf16 %v223, %v222
      %v271 = vpack.c.bf16 %v225, %v224
      %v272 = vpack.c.bf16 %v227, %v226
      %v273 = vpack.c.bf16 %v229, %v228
      %v274 = vpack.c.bf16 %v231, %v230
      %v275 = vpack.c.bf16 %v233, %v232
      %v276 = vpack.c.bf16 %v235, %v234
      %v277 = vpack.c.bf16 %v237, %v236
      %v278 = vpack.c.bf16 %v239, %v238
      %v279 = vpack.c.bf16 %v241, %v240
      %v280 = vpack.c.bf16 %v243, %v242
      %v281 = vpack.c.bf16 %v245, %v244
      %v282 = vpack.c.bf16 %v247, %v246
      %v283 = vpack.c.bf16 %v249, %v248
      %v284 = vpack.c.bf16 %v251, %v250
      %v285 = vpack.c.bf16 %v253, %v252
      %v286 = vlaneseq
      %v287 = vshrl.u32 %v286, 7
      %v288 = vsub.s32 0, %v287
      %v289 = vrot.slane %v187, %v288
      %v292 = vunpack.c.l.b16 %v188
      %v293 = vunpack.c.l.b16 %v189
      %v294 = vpack.c.b16 %v293, %v292
      %vm296 = vcmask 130048
      %v298 = vsel %vm296, %v254, 0
      %v301 = vsel %vm296, %v255, 0
      %v304 = vsel %vm296, %v256, 0
      %v307 = vsel %vm296, %v257, 0
      %v310 = vsel %vm296, %v258, 0
      %v313 = vsel %vm296, %v259, 0
      %v316 = vsel %vm296, %v260, 0
      %v319 = vsel %vm296, %v261, 0
      %v322 = vsel %vm296, %v262, 0
      %v325 = vsel %vm296, %v263, 0
      %v328 = vsel %vm296, %v264, 0
      %v331 = vsel %vm296, %v265, 0
      %v334 = vsel %vm296, %v266, 0
      %v337 = vsel %vm296, %v267, 0
      %v340 = vsel %vm296, %v268, 0
      %v343 = vsel %vm296, %v269, 0
      %v346 = vsel %vm296, %v270, 0
      %v349 = vsel %vm296, %v271, 0
      %v352 = vsel %vm296, %v272, 0
      %v355 = vsel %vm296, %v273, 0
      %v358 = vsel %vm296, %v274, 0
      %v361 = vsel %vm296, %v275, 0
      %v364 = vsel %vm296, %v276, 0
      %v367 = vsel %vm296, %v277, 0
      %v370 = vsel %vm296, %v278, 0
      %v373 = vsel %vm296, %v279, 0
      %v376 = vsel %vm296, %v280, 0
      %v379 = vsel %vm296, %v281, 0
      %v382 = vsel %vm296, %v282, 0
      %v385 = vsel %vm296, %v283, 0
      %v388 = vsel %vm296, %v284, 0
      %v391 = vsel %vm296, %v285, 0
      %393 = vmatprep.subr.bf16.mxu0 0
      %394 = vmatpush1.bf16.msra.mxu0 %v294
      %395 = vmatprep.subr.bf16.mxu0 0
      %396 = vmatpush1.bf16.msra.mxu0 0
      %397 = vmatprep.subr.bf16.mxu0 0
      %398 = vmatpush1.bf16.msra.mxu0 0
      %399 = vmatprep.subr.bf16.mxu0 0
      %400 = vmatpush1.bf16.msra.mxu0 0
      %401 = vmatprep.subr.bf16.mxu0 0
      %402 = vmatpush1.bf16.msra.mxu0 0
      %403 = vmatprep.subr.bf16.mxu0 0
      %404 = vmatpush1.bf16.msra.mxu0 0
      %405 = vmatprep.subr.bf16.mxu0 0
      %406 = vmatpush1.bf16.msra.mxu0 0
      %407 = vmatprep.subr.bf16.mxu0 0
      %408 = vmatpush1.bf16.msra.mxu0 0
      %409 = vmatprep.subr.bf16.mxu0 0
      %410 = vmatpush1.bf16.msra.mxu0 0
      %411 = vmatprep.subr.bf16.mxu0 0
      %412 = vmatpush1.bf16.msra.mxu0 0
      %413 = vmatprep.subr.bf16.mxu0 0
      %414 = vmatpush1.bf16.msra.mxu0 0
      %415 = vmatprep.subr.bf16.mxu0 0
      %416 = vmatpush1.bf16.msra.mxu0 0
      %417 = vmatprep.subr.bf16.mxu0 0
      %418 = vmatpush1.bf16.msra.mxu0 0
      %419 = vmatprep.subr.bf16.mxu0 0
      %420 = vmatpush1.bf16.msra.mxu0 0
      %421 = vmatprep.subr.bf16.mxu0 0
      %422 = vmatpush1.bf16.msra.mxu0 0
      %423 = vmatprep.subr.bf16.mxu0 0
      %424 = vmatpush1.bf16.msra.mxu0 0
      %425 = vmatprep.mubr.bf16.mxu0 0
      %426 = vmatmul.mubr.bf16.gmra.mrb[0].mxu0 %v298
      %v427 = vpop.f32.mrb[0].mxu0
      %v428 = vadd.f32 %v289, %v427
      %v429 = vpop.f32.mrb[0].mxu0
      %v430 = vpop.f32.mrb[0].mxu0
      %v431 = vadd.f32 %v289, %v430
      %v432 = vpop.f32.mrb[0].mxu0
      %433 = vmatprep.mubr.bf16.mxu0 0
      %434 = vmatmul.mubr.bf16.gmra.mrb[0].mxu0 %v301
      %v435 = vpop.f32.mrb[0].mxu0
      %v436 = vadd.f32 %v289, %v435
      %v437 = vpop.f32.mrb[0].mxu0
      %v438 = vpop.f32.mrb[0].mxu0
      %v439 = vadd.f32 %v289, %v438
      %v440 = vpop.f32.mrb[0].mxu0
      %441 = vmatprep.mubr.bf16.mxu0 0
      %442 = vmatmul.mubr.bf16.gmra.mrb[0].mxu0 %v304
      %v443 = vpop.f32.mrb[0].mxu0
      %v444 = vadd.f32 %v289, %v443
      %v445 = vpop.f32.mrb[0].mxu0
      %v446 = vpop.f32.mrb[0].mxu0
      %v447 = vadd.f32 %v289, %v446
      %v448 = vpop.f32.mrb[0].mxu0
      %449 = vmatprep.mubr.bf16.mxu0 0
      %450 = vmatmul.mubr.bf16.gmra.mrb[0].mxu0 %v307
      %v451 = vpop.f32.mrb[0].mxu0
      %v452 = vadd.f32 %v289, %v451
      %v453 = vpop.f32.mrb[0].mxu0
      %v454 = vpop.f32.mrb[0].mxu0
      %v455 = vadd.f32 %v289, %v454
      %v456 = vpop.f32.mrb[0].mxu0
      %457 = vmatprep.mubr.bf16.mxu0 0
      %458 = vmatmul.mubr.bf16.gmra.mrb[0].mxu0 %v310
      %v459 = vpop.f32.mrb[0].mxu0
      %v460 = vadd.f32 %v289, %v459
      %v461 = vpop.f32.mrb[0].mxu0
      %v462 = vpop.f32.mrb[0].mxu0
      %v463 = vadd.f32 %v289, %v462
      %v464 = vpop.f32.mrb[0].mxu0
      %465 = vmatprep.mubr.bf16.mxu0 0
      %466 = vmatmul.mubr.bf16.gmra.mrb[0].mxu0 %v313
      %v467 = vpop.f32.mrb[0].mxu0
      %v468 = vadd.f32 %v289, %v467
      %v469 = vpop.f32.mrb[0].mxu0
      %v470 = vpop.f32.mrb[0].mxu0
      %v471 = vadd.f32 %v289, %v470
      %v472 = vpop.f32.mrb[0].mxu0
      %473 = vmatprep.mubr.bf16.mxu0 0
      %474 = vmatmul.mubr.bf16.gmra.mrb[0].mxu0 %v316
      %v475 = vpop.f32.mrb[0].mxu0
      %v476 = vadd.f32 %v289, %v475
      %v477 = vpop.f32.mrb[0].mxu0
      %v478 = vpop.f32.mrb[0].mxu0
      %v479 = vadd.f32 %v289, %v478
      %v480 = vpop.f32.mrb[0].mxu0
      %481 = vmatprep.mubr.bf16.mxu0 0
      %482 = vmatmul.mubr.bf16.gmra.mrb[0].mxu0 %v319
      %v483 = vpop.f32.mrb[0].mxu0
      %v484 = vadd.f32 %v289, %v483
      %v485 = vpop.f32.mrb[0].mxu0
      %v486 = vpop.f32.mrb[0].mxu0
      %v487 = vadd.f32 %v289, %v486
      %v488 = vpop.f32.mrb[0].mxu0
      %489 = vmatprep.mubr.bf16.mxu0 0
      %490 = vmatmul.mubr.bf16.gmra.mrb[0].mxu0 %v322
      %v491 = vpop.f32.mrb[0].mxu0
      %v492 = vadd.f32 %v289, %v491
      %v493 = vpop.f32.mrb[0].mxu0
      %v494 = vpop.f32.mrb[0].mxu0
      %v495 = vadd.f32 %v289, %v494
      %v496 = vpop.f32.mrb[0].mxu0
      %497 = vmatprep.mubr.bf16.mxu0 0
      %498 = vmatmul.mubr.bf16.gmra.mrb[0].mxu0 %v325
      %v499 = vpop.f32.mrb[0].mxu0
      %v500 = vadd.f32 %v289, %v499
      %v501 = vpop.f32.mrb[0].mxu0
      %v502 = vpop.f32.mrb[0].mxu0
      %v503 = vadd.f32 %v289, %v502
      %v504 = vpop.f32.mrb[0].mxu0
      %505 = vmatprep.mubr.bf16.mxu0 0
      %506 = vmatmul.mubr.bf16.gmra.mrb[0].mxu0 %v328
      %v507 = vpop.f32.mrb[0].mxu0
      %v508 = vadd.f32 %v289, %v507
      %v509 = vpop.f32.mrb[0].mxu0
      %v510 = vpop.f32.mrb[0].mxu0
      %v511 = vadd.f32 %v289, %v510
      %v512 = vpop.f32.mrb[0].mxu0
      %513 = vmatprep.mubr.bf16.mxu0 0
      %514 = vmatmul.mubr.bf16.gmra.mrb[0].mxu0 %v331
      %v515 = vpop.f32.mrb[0].mxu0
      %v516 = vadd.f32 %v289, %v515
      %v517 = vpop.f32.mrb[0].mxu0
      %v518 = vpop.f32.mrb[0].mxu0
      %v519 = vadd.f32 %v289, %v518
      %v520 = vpop.f32.mrb[0].mxu0
      %521 = vmatprep.mubr.bf16.mxu0 0
      %522 = vmatmul.mubr.bf16.gmra.mrb[0].mxu0 %v334
      %v523 = vpop.f32.mrb[0].mxu0
      %v524 = vadd.f32 %v289, %v523
      %v525 = vpop.f32.mrb[0].mxu0
      %v526 = vpop.f32.mrb[0].mxu0
      %v527 = vadd.f32 %v289, %v526
      %v528 = vpop.f32.mrb[0].mxu0
      %529 = vmatprep.mubr.bf16.mxu0 0
      %530 = vmatmul.mubr.bf16.gmra.mrb[0].mxu0 %v337
      %v531 = vpop.f32.mrb[0].mxu0
      %v532 = vadd.f32 %v289, %v531
      %v533 = vpop.f32.mrb[0].mxu0
      %v534 = vpop.f32.mrb[0].mxu0
      %v535 = vadd.f32 %v289, %v534
      %v536 = vpop.f32.mrb[0].mxu0
      %537 = vmatprep.mubr.bf16.mxu0 0
      %538 = vmatmul.mubr.bf16.gmra.mrb[0].mxu0 %v340
      %v539 = vpop.f32.mrb[0].mxu0
      %v540 = vadd.f32 %v289, %v539
      %v541 = vpop.f32.mrb[0].mxu0
      %v542 = vpop.f32.mrb[0].mxu0
      %v543 = vadd.f32 %v289, %v542
      %v544 = vpop.f32.mrb[0].mxu0
      %545 = vmatprep.mubr.bf16.mxu0 0
      %546 = vmatmul.mubr.bf16.gmra.mrb[0].mxu0 %v343
      %v547 = vpop.f32.mrb[0].mxu0
      %v548 = vadd.f32 %v289, %v547
      %v549 = vpop.f32.mrb[0].mxu0
      %v550 = vpop.f32.mrb[0].mxu0
      %v551 = vadd.f32 %v289, %v550
      %v552 = vpop.f32.mrb[0].mxu0
      %553 = vmatprep.mubr.bf16.mxu0 0
      %554 = vmatmul.mubr.bf16.gmra.mrb[0].mxu0 %v346
      %v555 = vpop.f32.mrb[0].mxu0
      %v556 = vadd.f32 %v289, %v555
      %v557 = vpop.f32.mrb[0].mxu0
      %v558 = vpop.f32.mrb[0].mxu0
      %v559 = vadd.f32 %v289, %v558
      %v560 = vpop.f32.mrb[0].mxu0
      %561 = vmatprep.mubr.bf16.mxu0 0
      %562 = vmatmul.mubr.bf16.gmra.mrb[0].mxu0 %v349
      %v563 = vpop.f32.mrb[0].mxu0
      %v564 = vadd.f32 %v289, %v563
      %v565 = vpop.f32.mrb[0].mxu0
      %v566 = vpop.f32.mrb[0].mxu0
      %v567 = vadd.f32 %v289, %v566
      %v568 = vpop.f32.mrb[0].mxu0
      %569 = vmatprep.mubr.bf16.mxu0 0
      %570 = vmatmul.mubr.bf16.gmra.mrb[0].mxu0 %v352
      %v571 = vpop.f32.mrb[0].mxu0
      %v572 = vadd.f32 %v289, %v571
      %v573 = vpop.f32.mrb[0].mxu0
      %v574 = vpop.f32.mrb[0].mxu0
      %v575 = vadd.f32 %v289, %v574
      %v576 = vpop.f32.mrb[0].mxu0
      %577 = vmatprep.mubr.bf16.mxu0 0
      %578 = vmatmul.mubr.bf16.gmra.mrb[0].mxu0 %v355
      %v579 = vpop.f32.mrb[0].mxu0
      %v580 = vadd.f32 %v289, %v579
      %v581 = vpop.f32.mrb[0].mxu0
      %v582 = vpop.f32.mrb[0].mxu0
      %v583 = vadd.f32 %v289, %v582
      %v584 = vpop.f32.mrb[0].mxu0
      %585 = vmatprep.mubr.bf16.mxu0 0
      %586 = vmatmul.mubr.bf16.gmra.mrb[0].mxu0 %v358
      %v587 = vpop.f32.mrb[0].mxu0
      %v588 = vadd.f32 %v289, %v587
      %v589 = vpop.f32.mrb[0].mxu0
      %v590 = vpop.f32.mrb[0].mxu0
      %v591 = vadd.f32 %v289, %v590
      %v592 = vpop.f32.mrb[0].mxu0
      %593 = vmatprep.mubr.bf16.mxu0 0
      %594 = vmatmul.mubr.bf16.gmra.mrb[0].mxu0 %v361
      %v595 = vpop.f32.mrb[0].mxu0
      %v596 = vadd.f32 %v289, %v595
      %v597 = vpop.f32.mrb[0].mxu0
      %v598 = vpop.f32.mrb[0].mxu0
      %v599 = vadd.f32 %v289, %v598
      %v600 = vpop.f32.mrb[0].mxu0
      %601 = vmatprep.mubr.bf16.mxu0 0
      %602 = vmatmul.mubr.bf16.gmra.mrb[0].mxu0 %v364
      %v603 = vpop.f32.mrb[0].mxu0
      %v604 = vadd.f32 %v289, %v603
      %v605 = vpop.f32.mrb[0].mxu0
      %v606 = vpop.f32.mrb[0].mxu0
      %v607 = vadd.f32 %v289, %v606
      %v608 = vpop.f32.mrb[0].mxu0
      %609 = vmatprep.mubr.bf16.mxu0 0
      %610 = vmatmul.mubr.bf16.gmra.mrb[0].mxu0 %v367
      %v611 = vpop.f32.mrb[0].mxu0
      %v612 = vadd.f32 %v289, %v611
      %v613 = vpop.f32.mrb[0].mxu0
      %v614 = vpop.f32.mrb[0].mxu0
      %v615 = vadd.f32 %v289, %v614
      %v616 = vpop.f32.mrb[0].mxu0
      %617 = vmatprep.mubr.bf16.mxu0 0
      %618 = vmatmul.mubr.bf16.gmra.mrb[0].mxu0 %v370
      %v619 = vpop.f32.mrb[0].mxu0
      %v620 = vadd.f32 %v289, %v619
      %v621 = vpop.f32.mrb[0].mxu0
      %v622 = vpop.f32.mrb[0].mxu0
      %v623 = vadd.f32 %v289, %v622
      %v624 = vpop.f32.mrb[0].mxu0
      %625 = vmatprep.mubr.bf16.mxu0 0
      %626 = vmatmul.mubr.bf16.gmra.mrb[0].mxu0 %v373
      %v627 = vpop.f32.mrb[0].mxu0
      %v628 = vadd.f32 %v289, %v627
      %v629 = vpop.f32.mrb[0].mxu0
      %v630 = vpop.f32.mrb[0].mxu0
      %v631 = vadd.f32 %v289, %v630
      %v632 = vpop.f32.mrb[0].mxu0
      %633 = vmatprep.mubr.bf16.mxu0 0
      %634 = vmatmul.mubr.bf16.gmra.mrb[0].mxu0 %v376
      %v635 = vpop.f32.mrb[0].mxu0
      %v636 = vadd.f32 %v289, %v635
      %v637 = vpop.f32.mrb[0].mxu0
      %v638 = vpop.f32.mrb[0].mxu0
      %v639 = vadd.f32 %v289, %v638
      %v640 = vpop.f32.mrb[0].mxu0
      %641 = vmatprep.mubr.bf16.mxu0 0
      %642 = vmatmul.mubr.bf16.gmra.mrb[0].mxu0 %v379
      %v643 = vpop.f32.mrb[0].mxu0
      %v644 = vadd.f32 %v289, %v643
      %v645 = vpop.f32.mrb[0].mxu0
      %v646 = vpop.f32.mrb[0].mxu0
      %v647 = vadd.f32 %v289, %v646
      %v648 = vpop.f32.mrb[0].mxu0
      %649 = vmatprep.mubr.bf16.mxu0 0
      %650 = vmatmul.mubr.bf16.gmra.mrb[0].mxu0 %v382
      %v651 = vpop.f32.mrb[0].mxu0
      %v652 = vadd.f32 %v289, %v651
      %v653 = vpop.f32.mrb[0].mxu0
      %v654 = vpop.f32.mrb[0].mxu0
      %v655 = vadd.f32 %v289, %v654
      %v656 = vpop.f32.mrb[0].mxu0
      %657 = vmatprep.mubr.bf16.mxu0 0
      %658 = vmatmul.mubr.bf16.gmra.mrb[0].mxu0 %v385
      %v659 = vpop.f32.mrb[0].mxu0
      %v660 = vadd.f32 %v289, %v659
      %v661 = vpop.f32.mrb[0].mxu0
      %v662 = vpop.f32.mrb[0].mxu0
      %v663 = vadd.f32 %v289, %v662
      %v664 = vpop.f32.mrb[0].mxu0
      %665 = vmatprep.mubr.bf16.mxu0 0
      %666 = vmatmul.mubr.bf16.gmra.mrb[0].mxu0 %v388
      %v667 = vpop.f32.mrb[0].mxu0
      %v668 = vadd.f32 %v289, %v667
      %v669 = vpop.f32.mrb[0].mxu0
      %v670 = vpop.f32.mrb[0].mxu0
      %v671 = vadd.f32 %v289, %v670
      %v672 = vpop.f32.mrb[0].mxu0
      %673 = vmatprep.mubr.bf16.mxu0 0
      %674 = vmatmul.mubr.bf16.gmra.mrb[0].mxu0 %v391
      %v675 = vpop.f32.mrb[0].mxu0
      %v676 = vadd.f32 %v289, %v675
      %v677 = vpop.f32.mrb[0].mxu0
      %v678 = vpop.f32.mrb[0].mxu0
      %v679 = vadd.f32 %v289, %v678
      %v680 = vpop.f32.mrb[0].mxu0
      %681 = vdwg.mxu0
      %v682 = vmax.f32 %v428, 0.0
      %v683 = vmax.f32 %v431, 0.0
      %v684 = vmax.f32 %v436, 0.0
      %v685 = vmax.f32 %v439, 0.0
      %v686 = vmax.f32 %v444, 0.0
      %v687 = vmax.f32 %v447, 0.0
      %v688 = vmax.f32 %v452, 0.0
      %v689 = vmax.f32 %v455, 0.0
      %v690 = vmax.f32 %v460, 0.0
      %v691 = vmax.f32 %v463, 0.0
      %v692 = vmax.f32 %v468, 0.0
      %v693 = vmax.f32 %v471, 0.0
      %v694 = vmax.f32 %v476, 0.0
      %v695 = vmax.f32 %v479, 0.0
      %v696 = vmax.f32 %v484, 0.0
      %v697 = vmax.f32 %v487, 0.0
      %v698 = vmax.f32 %v492, 0.0
      %v699 = vmax.f32 %v495, 0.0
      %v700 = vmax.f32 %v500, 0.0
      %v701 = vmax.f32 %v503, 0.0
      %v702 = vmax.f32 %v508, 0.0
      %v703 = vmax.f32 %v511, 0.0
      %v704 = vmax.f32 %v516, 0.0
      %v705 = vmax.f32 %v519, 0.0
      %v706 = vmax.f32 %v524, 0.0
      %v707 = vmax.f32 %v527, 0.0
      %v708 = vmax.f32 %v532, 0.0
      %v709 = vmax.f32 %v535, 0.0
      %v710 = vmax.f32 %v540, 0.0
      %v711 = vmax.f32 %v543, 0.0
      %v712 = vmax.f32 %v548, 0.0
      %v713 = vmax.f32 %v551, 0.0
      %v714 = vmax.f32 %v556, 0.0
      %v715 = vmax.f32 %v559, 0.0
      %v716 = vmax.f32 %v564, 0.0
      %v717 = vmax.f32 %v567, 0.0
      %v718 = vmax.f32 %v572, 0.0
      %v719 = vmax.f32 %v575, 0.0
      %v720 = vmax.f32 %v580, 0.0
      %v721 = vmax.f32 %v583, 0.0
      %v722 = vmax.f32 %v588, 0.0
      %v723 = vmax.f32 %v591, 0.0
      %v724 = vmax.f32 %v596, 0.0
      %v725 = vmax.f32 %v599, 0.0
      %v726 = vmax.f32 %v604, 0.0
      %v727 = vmax.f32 %v607, 0.0
      %v728 = vmax.f32 %v612, 0.0
      %v729 = vmax.f32 %v615, 0.0
      %v730 = vmax.f32 %v620, 0.0
      %v731 = vmax.f32 %v623, 0.0
      %v732 = vmax.f32 %v628, 0.0
      %v733 = vmax.f32 %v631, 0.0
      %v734 = vmax.f32 %v636, 0.0
      %v735 = vmax.f32 %v639, 0.0
      %v736 = vmax.f32 %v644, 0.0
      %v737 = vmax.f32 %v647, 0.0
      %v738 = vmax.f32 %v652, 0.0
      %v739 = vmax.f32 %v655, 0.0
      %v740 = vmax.f32 %v660, 0.0
      %v741 = vmax.f32 %v663, 0.0
      %v742 = vmax.f32 %v668, 0.0
      %v743 = vmax.f32 %v671, 0.0
      %v744 = vmax.f32 %v676, 0.0
      %v745 = vmax.f32 %v679, 0.0
      %p746 = scmp.eq.s32.totalorder %s18, 0
      %p747 = scmp.eq.s32.totalorder %s19, 0
      %p748 = pnand %p746, %p747
      %p749 = pneg %p748
      // Predicated region
      $region33: #{actor_forward.1} parent=31 // pred_check
        _
      $region34: #{actor_forward.1} parent=31 // pred_check_branch
        %751 = sbr.rel (%p748) target = $region36
      $region35: #{actor_forward.1} parent=31 // pred_region
        %752 = vst [vmem:[#allocation2] sm:$0x3] 0.0
      $region36: #{actor_forward.1} parent=31 // pred_fallthru
        _
      // Predicated region
      $region37: #{actor_forward.1} parent=31 // pred_check
        %p753 = pneg %p746
      $region38: #{actor_forward.1} parent=31 // pred_check_branch
        %755 = sbr.rel (%p753) target = $region40
      $region39: #{actor_forward.1} parent=31 // pred_region
        %v756 = vadd.f32 %v682, %v683
        %v757 = vadd.f32 %v756, %v684
        %v758 = vadd.f32 %v757, %v685
        %v759 = vadd.f32 %v758, %v686
        %v760 = vadd.f32 %v759, %v687
        %v761 = vadd.f32 %v760, %v688
        %v762 = vadd.f32 %v761, %v689
        %v763 = vadd.f32 %v762, %v690
        %v764 = vadd.f32 %v763, %v691
        %v765 = vadd.f32 %v764, %v692
        %v766 = vadd.f32 %v765, %v693
        %v767 = vadd.f32 %v766, %v694
        %v768 = vadd.f32 %v767, %v695
        %v769 = vadd.f32 %v768, %v696
        %v770 = vadd.f32 %v769, %v697
        %v771 = vadd.f32 %v770, %v698
        %v772 = vadd.f32 %v771, %v699
        %v773 = vadd.f32 %v772, %v700
        %v774 = vadd.f32 %v773, %v701
        %v775 = vadd.f32 %v774, %v702
        %v776 = vadd.f32 %v775, %v703
        %v777 = vadd.f32 %v776, %v704
        %v778 = vadd.f32 %v777, %v705
        %v779 = vadd.f32 %v778, %v706
        %v780 = vadd.f32 %v779, %v707
        %v781 = vadd.f32 %v780, %v708
        %v782 = vadd.f32 %v781, %v709
        %v783 = vadd.f32 %v782, %v710
        %v784 = vadd.f32 %v783, %v711
        %v785 = vadd.f32 %v784, %v712
        %v786 = vadd.f32 %v785, %v713
        %v787 = vadd.f32 %v786, %v714
        %v788 = vadd.f32 %v787, %v715
        %v789 = vadd.f32 %v788, %v716
        %v790 = vadd.f32 %v789, %v717
        %v791 = vadd.f32 %v790, %v718
        %v792 = vadd.f32 %v791, %v719
        %v793 = vadd.f32 %v792, %v720
        %v794 = vadd.f32 %v793, %v721
        %v795 = vadd.f32 %v794, %v722
        %v796 = vadd.f32 %v795, %v723
        %v797 = vadd.f32 %v796, %v724
        %v798 = vadd.f32 %v797, %v725
        %v799 = vadd.f32 %v798, %v726
        %v800 = vadd.f32 %v799, %v727
        %v801 = vadd.f32 %v800, %v728
        %v802 = vadd.f32 %v801, %v729
        %v803 = vadd.f32 %v802, %v730
        %v804 = vadd.f32 %v803, %v731
        %v805 = vadd.f32 %v804, %v732
        %v806 = vadd.f32 %v805, %v733
        %v807 = vadd.f32 %v806, %v734
        %v808 = vadd.f32 %v807, %v735
        %v809 = vadd.f32 %v808, %v736
        %v810 = vadd.f32 %v809, %v737
        %v811 = vadd.f32 %v810, %v738
        %v812 = vadd.f32 %v811, %v739
        %v813 = vadd.f32 %v812, %v740
        %v814 = vadd.f32 %v813, %v741
        %v815 = vadd.f32 %v814, %v742
        %v816 = vadd.f32 %v815, %v743
        %v817 = vadd.f32 %v816, %v744
        %v818 = vadd.f32 %v817, %v745
        %v819 = vrot.slane %v818, 4
        %v820 = vadd.f32 %v818, %v819
        %v821 = vrot.slane %v820, 2
        %v822 = vadd.f32 %v820, %v821
        %v823 = vrot.slane %v822, 1
        %v824 = vadd.f32 %v822, %v823
        %v825 = vmul.f32 %v682, %v682
        %v826 = vmul.f32 %v683, %v683
        %v827 = vmul.f32 %v684, %v684
        %v828 = vmul.f32 %v685, %v685
        %v829 = vmul.f32 %v686, %v686
        %v830 = vmul.f32 %v687, %v687
        %v831 = vmul.f32 %v688, %v688
        %v832 = vmul.f32 %v689, %v689
        %v833 = vmul.f32 %v690, %v690
        %v834 = vmul.f32 %v691, %v691
        %v835 = vmul.f32 %v692, %v692
        %v836 = vmul.f32 %v693, %v693
        %v837 = vmul.f32 %v694, %v694
        %v838 = vmul.f32 %v695, %v695
        %v839 = vmul.f32 %v696, %v696
        %v840 = vmul.f32 %v697, %v697
        %v841 = vmul.f32 %v698, %v698
        %v842 = vmul.f32 %v699, %v699
        %v843 = vmul.f32 %v700, %v700
        %v844 = vmul.f32 %v701, %v701
        %v845 = vmul.f32 %v702, %v702
        %v846 = vmul.f32 %v703, %v703
        %v847 = vmul.f32 %v704, %v704
        %v848 = vmul.f32 %v705, %v705
        %v849 = vmul.f32 %v706, %v706
        %v850 = vmul.f32 %v707, %v707
        %v851 = vmul.f32 %v708, %v708
        %v852 = vmul.f32 %v709, %v709
        %v853 = vmul.f32 %v710, %v710
        %v854 = vmul.f32 %v711, %v711
        %v855 = vmul.f32 %v712, %v712
        %v856 = vmul.f32 %v713, %v713
        %v857 = vmul.f32 %v714, %v714
        %v858 = vmul.f32 %v715, %v715
        %v859 = vmul.f32 %v716, %v716
        %v860 = vmul.f32 %v717, %v717
        %v861 = vmul.f32 %v718, %v718
        %v862 = vmul.f32 %v719, %v719
        %v863 = vmul.f32 %v720, %v720
        %v864 = vmul.f32 %v721, %v721
        %v865 = vmul.f32 %v722, %v722
        %v866 = vmul.f32 %v723, %v723
        %v867 = vmul.f32 %v724, %v724
        %v868 = vmul.f32 %v725, %v725
        %v869 = vmul.f32 %v726, %v726
        %v870 = vmul.f32 %v727, %v727
        %v871 = vmul.f32 %v728, %v728
        %v872 = vmul.f32 %v729, %v729
        %v873 = vmul.f32 %v730, %v730
        %v874 = vmul.f32 %v731, %v731
        %v875 = vmul.f32 %v732, %v732
        %v876 = vmul.f32 %v733, %v733
        %v877 = vmul.f32 %v734, %v734
        %v878 = vmul.f32 %v735, %v735
        %v879 = vmul.f32 %v736, %v736
        %v880 = vmul.f32 %v737, %v737
        %v881 = vmul.f32 %v738, %v738
        %v882 = vmul.f32 %v739, %v739
        %v883 = vmul.f32 %v740, %v740
        %v884 = vmul.f32 %v741, %v741
        %v885 = vmul.f32 %v742, %v742
        %v886 = vmul.f32 %v743, %v743
        %v887 = vmul.f32 %v744, %v744
        %v888 = vmul.f32 %v745, %v745
        %v889 = vadd.f32 %v825, %v826
        %v890 = vadd.f32 %v889, %v827
        %v891 = vadd.f32 %v890, %v828
        %v892 = vadd.f32 %v891, %v829
        %v893 = vadd.f32 %v892, %v830
        %v894 = vadd.f32 %v893, %v831
        %v895 = vadd.f32 %v894, %v832
        %v896 = vadd.f32 %v895, %v833
        %v897 = vadd.f32 %v896, %v834
        %v898 = vadd.f32 %v897, %v835
        %v899 = vadd.f32 %v898, %v836
        %v900 = vadd.f32 %v899, %v837
        %v901 = vadd.f32 %v900, %v838
        %v902 = vadd.f32 %v901, %v839
        %v903 = vadd.f32 %v902, %v840
        %v904 = vadd.f32 %v903, %v841
        %v905 = vadd.f32 %v904, %v842
        %v906 = vadd.f32 %v905, %v843
        %v907 = vadd.f32 %v906, %v844
        %v908 = vadd.f32 %v907, %v845
        %v909 = vadd.f32 %v908, %v846
        %v910 = vadd.f32 %v909, %v847
        %v911 = vadd.f32 %v910, %v848
        %v912 = vadd.f32 %v911, %v849
        %v913 = vadd.f32 %v912, %v850
        %v914 = vadd.f32 %v913, %v851
        %v915 = vadd.f32 %v914, %v852
        %v916 = vadd.f32 %v915, %v853
        %v917 = vadd.f32 %v916, %v854
        %v918 = vadd.f32 %v917, %v855
        %v919 = vadd.f32 %v918, %v856
        %v920 = vadd.f32 %v919, %v857
        %v921 = vadd.f32 %v920, %v858
        %v922 = vadd.f32 %v921, %v859
        %v923 = vadd.f32 %v922, %v860
        %v924 = vadd.f32 %v923, %v861
        %v925 = vadd.f32 %v924, %v862
        %v926 = vadd.f32 %v925, %v863
        %v927 = vadd.f32 %v926, %v864
        %v928 = vadd.f32 %v927, %v865
        %v929 = vadd.f32 %v928, %v866
        %v930 = vadd.f32 %v929, %v867
        %v931 = vadd.f32 %v930, %v868
        %v932 = vadd.f32 %v931, %v869
        %v933 = vadd.f32 %v932, %v870
        %v934 = vadd.f32 %v933, %v871
        %v935 = vadd.f32 %v934, %v872
        %v936 = vadd.f32 %v935, %v873
        %v937 = vadd.f32 %v936, %v874
        %v938 = vadd.f32 %v937, %v875
        %v939 = vadd.f32 %v938, %v876
        %v940 = vadd.f32 %v939, %v877
        %v941 = vadd.f32 %v940, %v878
        %v942 = vadd.f32 %v941, %v879
        %v943 = vadd.f32 %v942, %v880
        %v944 = vadd.f32 %v943, %v881
        %v945 = vadd.f32 %v944, %v882
        %v946 = vadd.f32 %v945, %v883
        %v947 = vadd.f32 %v946, %v884
        %v948 = vadd.f32 %v947, %v885
        %v949 = vadd.f32 %v948, %v886
        %v950 = vadd.f32 %v949, %v887
        %v951 = vadd.f32 %v950, %v888
        %v952 = vrot.slane %v951, 4
        %v953 = vadd.f32 %v951, %v952
        %v954 = vrot.slane %v953, 2
        %v955 = vadd.f32 %v953, %v954
        %v956 = vrot.slane %v955, 1
        %v957 = vadd.f32 %v955, %v956
        %v958 = vld [vmem:[#allocation2] sm:$0x3]
        %vm959 = vcmask 1040384
        %v960 = vsel %vm959, %v824, %v957
        %v961 = vadd.f32 %v958, %v960
        %962 = vst [vmem:[#allocation2] sm:$0x3] %v961
        %963 = vst [vmem:[%s184] sm:$0xff] 0.0
        %964 = vst [vmem:[%s184 + $0x8] sm:$0xff] 0.0
        %965 = vst [vmem:[%s184 + $0x10] sm:$0xff] 0.0
        %966 = vst [vmem:[%s184 + $0x18] sm:$0xff] 0.0
        %967 = vst [vmem:[%s184 + $0x20] sm:$0xff] 0.0
        %968 = vst [vmem:[%s184 + $0x28] sm:$0xff] 0.0
        %969 = vst [vmem:[%s184 + $0x30] sm:$0xff] 0.0
        %970 = vst [vmem:[%s184 + $0x38] sm:$0xff] 0.0
        %971 = vst [vmem:[%s184 + $0x40] sm:$0xff] 0.0
        %972 = vst [vmem:[%s184 + $0x48] sm:$0xff] 0.0
        %973 = vst [vmem:[%s184 + $0x50] sm:$0xff] 0.0
        %974 = vst [vmem:[%s184 + $0x58] sm:$0xff] 0.0
        %975 = vst [vmem:[%s184 + $0x60] sm:$0xff] 0.0
        %976 = vst [vmem:[%s184 + $0x68] sm:$0xff] 0.0
        %977 = vst [vmem:[%s184 + $0x70] sm:$0xff] 0.0
        %978 = vst [vmem:[%s184 + $0x78] sm:$0xff] 0.0
        %979 = vst [vmem:[%s184 + $0x80] sm:$0xff] 0.0
        %980 = vst [vmem:[%s184 + $0x88] sm:$0xff] 0.0
        %981 = vst [vmem:[%s184 + $0x90] sm:$0xff] 0.0
        %982 = vst [vmem:[%s184 + $0x98] sm:$0xff] 0.0
        %983 = vst [vmem:[%s184 + $0xa0] sm:$0xff] 0.0
        %984 = vst [vmem:[%s184 + $0xa8] sm:$0xff] 0.0
        %985 = vst [vmem:[%s184 + $0xb0] sm:$0xff] 0.0
        %986 = vst [vmem:[%s184 + $0xb8] sm:$0xff] 0.0
        %987 = vst [vmem:[%s184 + $0xc0] sm:$0xff] 0.0
        %988 = vst [vmem:[%s184 + $0xc8] sm:$0xff] 0.0
        %989 = vst [vmem:[%s184 + $0xd0] sm:$0xff] 0.0
        %990 = vst [vmem:[%s184 + $0xd8] sm:$0xff] 0.0
        %991 = vst [vmem:[%s184 + $0xe0] sm:$0xff] 0.0
        %992 = vst [vmem:[%s184 + $0xe8] sm:$0xff] 0.0
        %993 = vst [vmem:[%s184 + $0xf0] sm:$0xff] 0.0
        %994 = vst [vmem:[%s184 + $0xf8] sm:$0xff] 0.0
        %995 = vst [vmem:[%s184 + $0x100] sm:$0xff] 0.0
        %996 = vst [vmem:[%s184 + $0x108] sm:$0xff] 0.0
        %997 = vst [vmem:[%s184 + $0x110] sm:$0xff] 0.0
        %998 = vst [vmem:[%s184 + $0x118] sm:$0xff] 0.0
        %999 = vst [vmem:[%s184 + $0x120] sm:$0xff] 0.0
        %1000 = vst [vmem:[%s184 + $0x128] sm:$0xff] 0.0
        %1001 = vst [vmem:[%s184 + $0x130] sm:$0xff] 0.0
        %1002 = vst [vmem:[%s184 + $0x138] sm:$0xff] 0.0
        %1003 = vst [vmem:[%s184 + $0x140] sm:$0xff] 0.0
        %1004 = vst [vmem:[%s184 + $0x148] sm:$0xff] 0.0
        %1005 = vst [vmem:[%s184 + $0x150] sm:$0xff] 0.0
        %1006 = vst [vmem:[%s184 + $0x158] sm:$0xff] 0.0
        %1007 = vst [vmem:[%s184 + $0x160] sm:$0xff] 0.0
        %1008 = vst [vmem:[%s184 + $0x168] sm:$0xff] 0.0
        %1009 = vst [vmem:[%s184 + $0x170] sm:$0xff] 0.0
        %1010 = vst [vmem:[%s184 + $0x178] sm:$0xff] 0.0
        %1011 = vst [vmem:[%s184 + $0x180] sm:$0xff] 0.0
        %1012 = vst [vmem:[%s184 + $0x188] sm:$0xff] 0.0
        %1013 = vst [vmem:[%s184 + $0x190] sm:$0xff] 0.0
        %1014 = vst [vmem:[%s184 + $0x198] sm:$0xff] 0.0
        %1015 = vst [vmem:[%s184 + $0x1a0] sm:$0xff] 0.0
        %1016 = vst [vmem:[%s184 + $0x1a8] sm:$0xff] 0.0
        %1017 = vst [vmem:[%s184 + $0x1b0] sm:$0xff] 0.0
        %1018 = vst [vmem:[%s184 + $0x1b8] sm:$0xff] 0.0
        %1019 = vst [vmem:[%s184 + $0x1c0] sm:$0xff] 0.0
        %1020 = vst [vmem:[%s184 + $0x1c8] sm:$0xff] 0.0
        %1021 = vst [vmem:[%s184 + $0x1d0] sm:$0xff] 0.0
        %1022 = vst [vmem:[%s184 + $0x1d8] sm:$0xff] 0.0
        %1023 = vst [vmem:[%s184 + $0x1e0] sm:$0xff] 0.0
        %1024 = vst [vmem:[%s184 + $0x1e8] sm:$0xff] 0.0
        %1025 = vst [vmem:[%s184 + $0x1f0] sm:$0xff] 0.0
        %1026 = vst [vmem:[%s184 + $0x1f8] sm:$0xff] 0.0
      $region40: #{actor_forward.1} parent=31 // pred_fallthru
        _
      %p1027 = scmp.eq.s32.totalorder %s18, 1
      // Predicated region
      $region41: #{actor_forward.1} parent=31 // pred_check
        %p1028 = pneg %p1027
      $region42: #{actor_forward.1} parent=31 // pred_check_branch
        %1030 = sbr.rel (%p1028) target = $region44
      $region43: #{actor_forward.1} parent=31 // pred_region
        %v1031 = vld [vmem:[#allocation2] sm:$0x1]
        %v1032 = vmul.f32 %v1031, 0.0009765625
        %v1033 = vld [vmem:[#allocation2 + $0x1] sm:$0x1]
        %v1034 = vmul.f32 %v1033, 0.0009765625
        %v1035 = vmul.f32 %v1032, %v1032
        %v1036 = vsub.f32 %v1034, %v1035
        %v1037 = vmax.f32 %v1036, 0.0
        %v1038 = vlaneseq
        %v1039 = vshrl.u32 %v1038, 7
        %v1040 = vsub.s32 0, %v1039
        %v1041 = vrot.slane %v1032, %v1040
        %v1042 = vsub.f32 %v682, %v1041
        %v1043 = vsub.f32 %v683, %v1041
        %v1044 = vsub.f32 %v684, %v1041
        %v1045 = vsub.f32 %v685, %v1041
        %v1046 = vsub.f32 %v686, %v1041
        %v1047 = vsub.f32 %v687, %v1041
        %v1048 = vsub.f32 %v688, %v1041
        %v1049 = vsub.f32 %v689, %v1041
        %v1050 = vsub.f32 %v690, %v1041
        %v1051 = vsub.f32 %v691, %v1041
        %v1052 = vsub.f32 %v692, %v1041
        %v1053 = vsub.f32 %v693, %v1041
        %v1054 = vsub.f32 %v694, %v1041
        %v1055 = vsub.f32 %v695, %v1041
        %v1056 = vsub.f32 %v696, %v1041
        %v1057 = vsub.f32 %v697, %v1041
        %v1058 = vsub.f32 %v698, %v1041
        %v1059 = vsub.f32 %v699, %v1041
        %v1060 = vsub.f32 %v700, %v1041
        %v1061 = vsub.f32 %v701, %v1041
        %v1062 = vsub.f32 %v702, %v1041
        %v1063 = vsub.f32 %v703, %v1041
        %v1064 = vsub.f32 %v704, %v1041
        %v1065 = vsub.f32 %v705, %v1041
        %v1066 = vsub.f32 %v706, %v1041
        %v1067 = vsub.f32 %v707, %v1041
        %v1068 = vsub.f32 %v708, %v1041
        %v1069 = vsub.f32 %v709, %v1041
        %v1070 = vsub.f32 %v710, %v1041
        %v1071 = vsub.f32 %v711, %v1041
        %v1072 = vsub.f32 %v712, %v1041
        %v1073 = vsub.f32 %v713, %v1041
        %v1074 = vsub.f32 %v714, %v1041
        %v1075 = vsub.f32 %v715, %v1041
        %v1076 = vsub.f32 %v716, %v1041
        %v1077 = vsub.f32 %v717, %v1041
        %v1078 = vsub.f32 %v718, %v1041
        %v1079 = vsub.f32 %v719, %v1041
        %v1080 = vsub.f32 %v720, %v1041
        %v1081 = vsub.f32 %v721, %v1041
        %v1082 = vsub.f32 %v722, %v1041
        %v1083 = vsub.f32 %v723, %v1041
        %v1084 = vsub.f32 %v724, %v1041
        %v1085 = vsub.f32 %v725, %v1041
        %v1086 = vsub.f32 %v726, %v1041
        %v1087 = vsub.f32 %v727, %v1041
        %v1088 = vsub.f32 %v728, %v1041
        %v1089 = vsub.f32 %v729, %v1041
        %v1090 = vsub.f32 %v730, %v1041
        %v1091 = vsub.f32 %v731, %v1041
        %v1092 = vsub.f32 %v732, %v1041
        %v1093 = vsub.f32 %v733, %v1041
        %v1094 = vsub.f32 %v734, %v1041
        %v1095 = vsub.f32 %v735, %v1041
        %v1096 = vsub.f32 %v736, %v1041
        %v1097 = vsub.f32 %v737, %v1041
        %v1098 = vsub.f32 %v738, %v1041
        %v1099 = vsub.f32 %v739, %v1041
        %v1100 = vsub.f32 %v740, %v1041
        %v1101 = vsub.f32 %v741, %v1041
        %v1102 = vsub.f32 %v742, %v1041
        %v1103 = vsub.f32 %v743, %v1041
        %v1104 = vsub.f32 %v744, %v1041
        %v1105 = vsub.f32 %v745, %v1041
        %v1106 = vadd.f32 %v1037, 1e-05
        %v1107 = vrsqrt.pop %v1106
        %v1108 = vlaneseq
        %v1109 = vshrl.u32 %v1108, 7
        %v1110 = vsub.s32 0, %v1109
        %v1111 = vrot.slane %v1107, %v1110
        %v1112 = vmul.f32 %v1042, %v1111
        %v1113 = vmul.f32 %v1043, %v1111
        %v1114 = vmul.f32 %v1044, %v1111
        %v1115 = vmul.f32 %v1045, %v1111
        %v1116 = vmul.f32 %v1046, %v1111
        %v1117 = vmul.f32 %v1047, %v1111
        %v1118 = vmul.f32 %v1048, %v1111
        %v1119 = vmul.f32 %v1049, %v1111
        %v1120 = vmul.f32 %v1050, %v1111
        %v1121 = vmul.f32 %v1051, %v1111
        %v1122 = vmul.f32 %v1052, %v1111
        %v1123 = vmul.f32 %v1053, %v1111
        %v1124 = vmul.f32 %v1054, %v1111
        %v1125 = vmul.f32 %v1055, %v1111
        %v1126 = vmul.f32 %v1056, %v1111
        %v1127 = vmul.f32 %v1057, %v1111
        %v1128 = vmul.f32 %v1058, %v1111
        %v1129 = vmul.f32 %v1059, %v1111
        %v1130 = vmul.f32 %v1060, %v1111
        %v1131 = vmul.f32 %v1061, %v1111
        %v1132 = vmul.f32 %v1062, %v1111
        %v1133 = vmul.f32 %v1063, %v1111
        %v1134 = vmul.f32 %v1064, %v1111
        %v1135 = vmul.f32 %v1065, %v1111
        %v1136 = vmul.f32 %v1066, %v1111
        %v1137 = vmul.f32 %v1067, %v1111
        %v1138 = vmul.f32 %v1068, %v1111
        %v1139 = vmul.f32 %v1069, %v1111
        %v1140 = vmul.f32 %v1070, %v1111
        %v1141 = vmul.f32 %v1071, %v1111
        %v1142 = vmul.f32 %v1072, %v1111
        %v1143 = vmul.f32 %v1073, %v1111
        %v1144 = vmul.f32 %v1074, %v1111
        %v1145 = vmul.f32 %v1075, %v1111
        %v1146 = vmul.f32 %v1076, %v1111
        %v1147 = vmul.f32 %v1077, %v1111
        %v1148 = vmul.f32 %v1078, %v1111
        %v1149 = vmul.f32 %v1079, %v1111
        %v1150 = vmul.f32 %v1080, %v1111
        %v1151 = vmul.f32 %v1081, %v1111
        %v1152 = vmul.f32 %v1082, %v1111
        %v1153 = vmul.f32 %v1083, %v1111
        %v1154 = vmul.f32 %v1084, %v1111
        %v1155 = vmul.f32 %v1085, %v1111
        %v1156 = vmul.f32 %v1086, %v1111
        %v1157 = vmul.f32 %v1087, %v1111
        %v1158 = vmul.f32 %v1088, %v1111
        %v1159 = vmul.f32 %v1089, %v1111
        %v1160 = vmul.f32 %v1090, %v1111
        %v1161 = vmul.f32 %v1091, %v1111
        %v1162 = vmul.f32 %v1092, %v1111
        %v1163 = vmul.f32 %v1093, %v1111
        %v1164 = vmul.f32 %v1094, %v1111
        %v1165 = vmul.f32 %v1095, %v1111
        %v1166 = vmul.f32 %v1096, %v1111
        %v1167 = vmul.f32 %v1097, %v1111
        %v1168 = vmul.f32 %v1098, %v1111
        %v1169 = vmul.f32 %v1099, %v1111
        %v1170 = vmul.f32 %v1100, %v1111
        %v1171 = vmul.f32 %v1101, %v1111
        %v1172 = vmul.f32 %v1102, %v1111
        %v1173 = vmul.f32 %v1103, %v1111
        %v1174 = vmul.f32 %v1104, %v1111
        %v1175 = vmul.f32 %v1105, %v1111
        %v1176 = vlaneseq
        %v1177 = vshrl.u32 %v1176, 7
        %v1178 = vsub.s32 1, %v1177
        %v1179 = vrot.slane %v187, %v1178
        %v1180 = vmul.f32 %v1112, %v1179
        %v1181 = vmul.f32 %v1113, %v1179
        %v1182 = vmul.f32 %v1114, %v1179
        %v1183 = vmul.f32 %v1115, %v1179
        %v1184 = vmul.f32 %v1116, %v1179
        %v1185 = vmul.f32 %v1117, %v1179
        %v1186 = vmul.f32 %v1118, %v1179
        %v1187 = vmul.f32 %v1119, %v1179
        %v1188 = vmul.f32 %v1120, %v1179
        %v1189 = vmul.f32 %v1121, %v1179
        %v1190 = vmul.f32 %v1122, %v1179
        %v1191 = vmul.f32 %v1123, %v1179
        %v1192 = vmul.f32 %v1124, %v1179
        %v1193 = vmul.f32 %v1125, %v1179
        %v1194 = vmul.f32 %v1126, %v1179
        %v1195 = vmul.f32 %v1127, %v1179
        %v1196 = vmul.f32 %v1128, %v1179
        %v1197 = vmul.f32 %v1129, %v1179
        %v1198 = vmul.f32 %v1130, %v1179
        %v1199 = vmul.f32 %v1131, %v1179
        %v1200 = vmul.f32 %v1132, %v1179
        %v1201 = vmul.f32 %v1133, %v1179
        %v1202 = vmul.f32 %v1134, %v1179
        %v1203 = vmul.f32 %v1135, %v1179
        %v1204 = vmul.f32 %v1136, %v1179
        %v1205 = vmul.f32 %v1137, %v1179
        %v1206 = vmul.f32 %v1138, %v1179
        %v1207 = vmul.f32 %v1139, %v1179
        %v1208 = vmul.f32 %v1140, %v1179
        %v1209 = vmul.f32 %v1141, %v1179
        %v1210 = vmul.f32 %v1142, %v1179
        %v1211 = vmul.f32 %v1143, %v1179
        %v1212 = vmul.f32 %v1144, %v1179
        %v1213 = vmul.f32 %v1145, %v1179
        %v1214 = vmul.f32 %v1146, %v1179
        %v1215 = vmul.f32 %v1147, %v1179
        %v1216 = vmul.f32 %v1148, %v1179
        %v1217 = vmul.f32 %v1149, %v1179
        %v1218 = vmul.f32 %v1150, %v1179
        %v1219 = vmul.f32 %v1151, %v1179
        %v1220 = vmul.f32 %v1152, %v1179
        %v1221 = vmul.f32 %v1153, %v1179
        %v1222 = vmul.f32 %v1154, %v1179
        %v1223 = vmul.f32 %v1155, %v1179
        %v1224 = vmul.f32 %v1156, %v1179
        %v1225 = vmul.f32 %v1157, %v1179
        %v1226 = vmul.f32 %v1158, %v1179
        %v1227 = vmul.f32 %v1159, %v1179
        %v1228 = vmul.f32 %v1160, %v1179
        %v1229 = vmul.f32 %v1161, %v1179
        %v1230 = vmul.f32 %v1162, %v1179
        %v1231 = vmul.f32 %v1163, %v1179
        %v1232 = vmul.f32 %v1164, %v1179
        %v1233 = vmul.f32 %v1165, %v1179
        %v1234 = vmul.f32 %v1166, %v1179
        %v1235 = vmul.f32 %v1167, %v1179
        %v1236 = vmul.f32 %v1168, %v1179
        %v1237 = vmul.f32 %v1169, %v1179
        %v1238 = vmul.f32 %v1170, %v1179
        %v1239 = vmul.f32 %v1171, %v1179
        %v1240 = vmul.f32 %v1172, %v1179
        %v1241 = vmul.f32 %v1173, %v1179
        %v1242 = vmul.f32 %v1174, %v1179
        %v1243 = vmul.f32 %v1175, %v1179
        %v1244 = vlaneseq
        %v1245 = vshrl.u32 %v1244, 7
        %v1246 = vsub.s32 2, %v1245
        %v1247 = vrot.slane %v187, %v1246
        %v1248 = vadd.f32 %v1180, %v1247
        %v1249 = vadd.f32 %v1181, %v1247
        %v1250 = vadd.f32 %v1182, %v1247
        %v1251 = vadd.f32 %v1183, %v1247
        %v1252 = vadd.f32 %v1184, %v1247
        %v1253 = vadd.f32 %v1185, %v1247
        %v1254 = vadd.f32 %v1186, %v1247
        %v1255 = vadd.f32 %v1187, %v1247
        %v1256 = vadd.f32 %v1188, %v1247
        %v1257 = vadd.f32 %v1189, %v1247
        %v1258 = vadd.f32 %v1190, %v1247
        %v1259 = vadd.f32 %v1191, %v1247
        %v1260 = vadd.f32 %v1192, %v1247
        %v1261 = vadd.f32 %v1193, %v1247
        %v1262 = vadd.f32 %v1194, %v1247
        %v1263 = vadd.f32 %v1195, %v1247
        %v1264 = vadd.f32 %v1196, %v1247
        %v1265 = vadd.f32 %v1197, %v1247
        %v1266 = vadd.f32 %v1198, %v1247
        %v1267 = vadd.f32 %v1199, %v1247
        %v1268 = vadd.f32 %v1200, %v1247
        %v1269 = vadd.f32 %v1201, %v1247
        %v1270 = vadd.f32 %v1202, %v1247
        %v1271 = vadd.f32 %v1203, %v1247
        %v1272 = vadd.f32 %v1204, %v1247
        %v1273 = vadd.f32 %v1205, %v1247
        %v1274 = vadd.f32 %v1206, %v1247
        %v1275 = vadd.f32 %v1207, %v1247
        %v1276 = vadd.f32 %v1208, %v1247
        %v1277 = vadd.f32 %v1209, %v1247
        %v1278 = vadd.f32 %v1210, %v1247
        %v1279 = vadd.f32 %v1211, %v1247
        %v1280 = vadd.f32 %v1212, %v1247
        %v1281 = vadd.f32 %v1213, %v1247
        %v1282 = vadd.f32 %v1214, %v1247
        %v1283 = vadd.f32 %v1215, %v1247
        %v1284 = vadd.f32 %v1216, %v1247
        %v1285 = vadd.f32 %v1217, %v1247
        %v1286 = vadd.f32 %v1218, %v1247
        %v1287 = vadd.f32 %v1219, %v1247
        %v1288 = vadd.f32 %v1220, %v1247
        %v1289 = vadd.f32 %v1221, %v1247
        %v1290 = vadd.f32 %v1222, %v1247
        %v1291 = vadd.f32 %v1223, %v1247
        %v1292 = vadd.f32 %v1224, %v1247
        %v1293 = vadd.f32 %v1225, %v1247
        %v1294 = vadd.f32 %v1226, %v1247
        %v1295 = vadd.f32 %v1227, %v1247
        %v1296 = vadd.f32 %v1228, %v1247
        %v1297 = vadd.f32 %v1229, %v1247
        %v1298 = vadd.f32 %v1230, %v1247
        %v1299 = vadd.f32 %v1231, %v1247
        %v1300 = vadd.f32 %v1232, %v1247
        %v1301 = vadd.f32 %v1233, %v1247
        %v1302 = vadd.f32 %v1234, %v1247
        %v1303 = vadd.f32 %v1235, %v1247
        %v1304 = vadd.f32 %v1236, %v1247
        %v1305 = vadd.f32 %v1237, %v1247
        %v1306 = vadd.f32 %v1238, %v1247
        %v1307 = vadd.f32 %v1239, %v1247
        %v1308 = vadd.f32 %v1240, %v1247
        %v1309 = vadd.f32 %v1241, %v1247
        %v1310 = vadd.f32 %v1242, %v1247
        %v1311 = vadd.f32 %v1243, %v1247
        %v1312 = vld [vmem:[%s1 + $0x8] sm:$0xf]
        %v1313 = vld [vmem:[%s1 + $0xc] sm:$0xf]
        %v1314 = vld [vmem:[%s1 + $0x10] sm:$0xf]
        %v1315 = vld [vmem:[%s1 + $0x14] sm:$0xf]
        %v1316 = vld [vmem:[%s1 + $0x18] sm:$0xf]
        %v1317 = vld [vmem:[%s1 + $0x1c] sm:$0xf]
        %v1318 = vld [vmem:[%s1 + $0x20] sm:$0xf]
        %v1319 = vld [vmem:[%s1 + $0x24] sm:$0xf]
        %v1320 = vld [vmem:[%s1 + $0x28] sm:$0xf]
        %v1321 = vld [vmem:[%s1 + $0x2c] sm:$0xf]
        %v1322 = vld [vmem:[%s1 + $0x30] sm:$0xf]
        %v1323 = vld [vmem:[%s1 + $0x34] sm:$0xf]
        %v1324 = vld [vmem:[%s1 + $0x38] sm:$0xf]
        %v1325 = vld [vmem:[%s1 + $0x3c] sm:$0xf]
        %v1326 = vld [vmem:[%s1 + $0x40] sm:$0xf]
        %v1327 = vld [vmem:[%s1 + $0x44] sm:$0xf]
        %v1328 = vpack.c.bf16 %v1249, %v1248
        %v1329 = vpack.c.bf16 %v1251, %v1250
        %v1330 = vpack.c.bf16 %v1253, %v1252
        %v1331 = vpack.c.bf16 %v1255, %v1254
        %v1332 = vpack.c.bf16 %v1257, %v1256
        %v1333 = vpack.c.bf16 %v1259, %v1258
        %v1334 = vpack.c.bf16 %v1261, %v1260
        %v1335 = vpack.c.bf16 %v1263, %v1262
        %v1336 = vpack.c.bf16 %v1265, %v1264
        %v1337 = vpack.c.bf16 %v1267, %v1266
        %v1338 = vpack.c.bf16 %v1269, %v1268
        %v1339 = vpack.c.bf16 %v1271, %v1270
        %v1340 = vpack.c.bf16 %v1273, %v1272
        %v1341 = vpack.c.bf16 %v1275, %v1274
        %v1342 = vpack.c.bf16 %v1277, %v1276
        %v1343 = vpack.c.bf16 %v1279, %v1278
        %v1344 = vpack.c.bf16 %v1281, %v1280
        %v1345 = vpack.c.bf16 %v1283, %v1282
        %v1346 = vpack.c.bf16 %v1285, %v1284
        %v1347 = vpack.c.bf16 %v1287, %v1286
        %v1348 = vpack.c.bf16 %v1289, %v1288
        %v1349 = vpack.c.bf16 %v1291, %v1290
        %v1350 = vpack.c.bf16 %v1293, %v1292
        %v1351 = vpack.c.bf16 %v1295, %v1294
        %v1352 = vpack.c.bf16 %v1297, %v1296
        %v1353 = vpack.c.bf16 %v1299, %v1298
        %v1354 = vpack.c.bf16 %v1301, %v1300
        %v1355 = vpack.c.bf16 %v1303, %v1302
        %v1356 = vpack.c.bf16 %v1305, %v1304
        %v1357 = vpack.c.bf16 %v1307, %v1306
        %v1358 = vpack.c.bf16 %v1309, %v1308
        %v1359 = vpack.c.bf16 %v1311, %v1310
        %v1360 = vlaneseq
        %v1361 = vshrl.u32 %v1360, 7
        %v1362 = vsub.s32 3, %v1361
        %v1363 = vrot.slane %v187, %v1362
        %v1380 = vunpack.c.l.b16 %v1312
        %v1381 = vunpack.c.l.b16 %v1313
        %v1382 = vunpack.c.l.b16 %v1314
        %v1383 = vunpack.c.l.b16 %v1315
        %v1384 = vunpack.c.l.b16 %v1316
        %v1385 = vunpack.c.l.b16 %v1317
        %v1386 = vunpack.c.l.b16 %v1318
        %v1387 = vunpack.c.l.b16 %v1319
        %v1388 = vunpack.c.l.b16 %v1320
        %v1389 = vunpack.c.l.b16 %v1321
        %v1390 = vunpack.c.l.b16 %v1322
        %v1391 = vunpack.c.l.b16 %v1323
        %v1392 = vunpack.c.l.b16 %v1324
        %v1393 = vunpack.c.l.b16 %v1325
        %v1394 = vunpack.c.l.b16 %v1326
        %v1395 = vunpack.c.l.b16 %v1327
        %v1396 = vpack.c.b16 %v1381, %v1380
        %v1397 = vpack.c.b16 %v1383, %v1382
        %v1398 = vpack.c.b16 %v1385, %v1384
        %v1399 = vpack.c.b16 %v1387, %v1386
        %v1400 = vpack.c.b16 %v1389, %v1388
        %v1401 = vpack.c.b16 %v1391, %v1390
        %v1402 = vpack.c.b16 %v1393, %v1392
        %v1403 = vpack.c.b16 %v1395, %v1394
        %1412 = vmatprep.subr.bf16.mxu0 0
        %1413 = vmatpush1.bf16.msra.mxu0 %v1396
        %1414 = vmatprep.subr.bf16.mxu0 0
        %1415 = vmatpush1.bf16.msra.mxu0 %v1397
        %1416 = vmatprep.subr.bf16.mxu0 0
        %1417 = vmatpush1.bf16.msra.mxu0 %v1398
        %1418 = vmatprep.subr.bf16.mxu0 0
        %1419 = vmatpush1.bf16.msra.mxu0 %v1399
        %1420 = vmatprep.subr.bf16.mxu0 0
        %1421 = vmatpush1.bf16.msra.mxu0 %v1400
        %1422 = vmatprep.subr.bf16.mxu0 0
        %1423 = vmatpush1.bf16.msra.mxu0 %v1401
        %1424 = vmatprep.subr.bf16.mxu0 0
        %1425 = vmatpush1.bf16.msra.mxu0 %v1402
        %1426 = vmatprep.subr.bf16.mxu0 0
        %1427 = vmatpush1.bf16.msra.mxu0 %v1403
        %1428 = vmatprep.subr.bf16.mxu0 0
        %1429 = vmatpush1.bf16.msra.mxu0 0
        %1430 = vmatprep.subr.bf16.mxu0 0
        %1431 = vmatpush1.bf16.msra.mxu0 0
        %1432 = vmatprep.subr.bf16.mxu0 0
        %1433 = vmatpush1.bf16.msra.mxu0 0
        %1434 = vmatprep.subr.bf16.mxu0 0
        %1435 = vmatpush1.bf16.msra.mxu0 0
        %1436 = vmatprep.subr.bf16.mxu0 0
        %1437 = vmatpush1.bf16.msra.mxu0 0
        %1438 = vmatprep.subr.bf16.mxu0 0
        %1439 = vmatpush1.bf16.msra.mxu0 0
        %1440 = vmatprep.subr.bf16.mxu0 0
        %1441 = vmatpush1.bf16.msra.mxu0 0
        %1442 = vmatprep.subr.bf16.mxu0 0
        %1443 = vmatpush1.bf16.msra.mxu0 0
        %1444 = vmatprep.mubr.bf16.mxu0 0
        %1445 = vmatmul.mubr.bf16.gmra.mrb[0].mxu0 %v1328
        %v1446 = vpop.f32.mrb[0].mxu0
        %v1447 = vadd.f32 %v1363, %v1446
        %v1448 = vpop.f32.mrb[0].mxu0
        %v1449 = vpop.f32.mrb[0].mxu0
        %v1450 = vadd.f32 %v1363, %v1449
        %v1451 = vpop.f32.mrb[0].mxu0
        %1452 = vmatprep.mubr.bf16.mxu0 0
        %1453 = vmatmul.mubr.bf16.gmra.mrb[0].mxu0 %v1329
        %v1454 = vpop.f32.mrb[0].mxu0
        %v1455 = vadd.f32 %v1363, %v1454
        %v1456 = vpop.f32.mrb[0].mxu0
        %v1457 = vpop.f32.mrb[0].mxu0
        %v1458 = vadd.f32 %v1363, %v1457
        %v1459 = vpop.f32.mrb[0].mxu0
        %1460 = vmatprep.mubr.bf16.mxu0 0
        %1461 = vmatmul.mubr.bf16.gmra.mrb[0].mxu0 %v1330
        %v1462 = vpop.f32.mrb[0].mxu0
        %v1463 = vadd.f32 %v1363, %v1462
        %v1464 = vpop.f32.mrb[0].mxu0
        %v1465 = vpop.f32.mrb[0].mxu0
        %v1466 = vadd.f32 %v1363, %v1465
        %v1467 = vpop.f32.mrb[0].mxu0
        %1468 = vmatprep.mubr.bf16.mxu0 0
        %1469 = vmatmul.mubr.bf16.gmra.mrb[0].mxu0 %v1331
        %v1470 = vpop.f32.mrb[0].mxu0
        %v1471 = vadd.f32 %v1363, %v1470
        %v1472 = vpop.f32.mrb[0].mxu0
        %v1473 = vpop.f32.mrb[0].mxu0
        %v1474 = vadd.f32 %v1363, %v1473
        %v1475 = vpop.f32.mrb[0].mxu0
        %1476 = vmatprep.mubr.bf16.mxu0 0
        %1477 = vmatmul.mubr.bf16.gmra.mrb[0].mxu0 %v1332
        %v1478 = vpop.f32.mrb[0].mxu0
        %v1479 = vadd.f32 %v1363, %v1478
        %v1480 = vpop.f32.mrb[0].mxu0
        %v1481 = vpop.f32.mrb[0].mxu0
        %v1482 = vadd.f32 %v1363, %v1481
        %v1483 = vpop.f32.mrb[0].mxu0
        %1484 = vmatprep.mubr.bf16.mxu0 0
        %1485 = vmatmul.mubr.bf16.gmra.mrb[0].mxu0 %v1333
        %v1486 = vpop.f32.mrb[0].mxu0
        %v1487 = vadd.f32 %v1363, %v1486
        %v1488 = vpop.f32.mrb[0].mxu0
        %v1489 = vpop.f32.mrb[0].mxu0
        %v1490 = vadd.f32 %v1363, %v1489
        %v1491 = vpop.f32.mrb[0].mxu0
        %1492 = vmatprep.mubr.bf16.mxu0 0
        %1493 = vmatmul.mubr.bf16.gmra.mrb[0].mxu0 %v1334
        %v1494 = vpop.f32.mrb[0].mxu0
        %v1495 = vadd.f32 %v1363, %v1494
        %v1496 = vpop.f32.mrb[0].mxu0
        %v1497 = vpop.f32.mrb[0].mxu0
        %v1498 = vadd.f32 %v1363, %v1497
        %v1499 = vpop.f32.mrb[0].mxu0
        %1500 = vmatprep.mubr.bf16.mxu0 0
        %1501 = vmatmul.mubr.bf16.gmra.mrb[0].mxu0 %v1335
        %v1502 = vpop.f32.mrb[0].mxu0
        %v1503 = vadd.f32 %v1363, %v1502
        %v1504 = vpop.f32.mrb[0].mxu0
        %v1505 = vpop.f32.mrb[0].mxu0
        %v1506 = vadd.f32 %v1363, %v1505
        %v1507 = vpop.f32.mrb[0].mxu0
        %1508 = vmatprep.mubr.bf16.mxu0 0
        %1509 = vmatmul.mubr.bf16.gmra.mrb[0].mxu0 %v1336
        %v1510 = vpop.f32.mrb[0].mxu0
        %v1511 = vadd.f32 %v1363, %v1510
        %v1512 = vpop.f32.mrb[0].mxu0
        %v1513 = vpop.f32.mrb[0].mxu0
        %v1514 = vadd.f32 %v1363, %v1513
        %v1515 = vpop.f32.mrb[0].mxu0
        %1516 = vmatprep.mubr.bf16.mxu0 0
        %1517 = vmatmul.mubr.bf16.gmra.mrb[0].mxu0 %v1337
        %v1518 = vpop.f32.mrb[0].mxu0
        %v1519 = vadd.f32 %v1363, %v1518
        %v1520 = vpop.f32.mrb[0].mxu0
        %v1521 = vpop.f32.mrb[0].mxu0
        %v1522 = vadd.f32 %v1363, %v1521
        %v1523 = vpop.f32.mrb[0].mxu0
        %1524 = vmatprep.mubr.bf16.mxu0 0
        %1525 = vmatmul.mubr.bf16.gmra.mrb[0].mxu0 %v1338
        %v1526 = vpop.f32.mrb[0].mxu0
        %v1527 = vadd.f32 %v1363, %v1526
        %v1528 = vpop.f32.mrb[0].mxu0
        %v1529 = vpop.f32.mrb[0].mxu0
        %v1530 = vadd.f32 %v1363, %v1529
        %v1531 = vpop.f32.mrb[0].mxu0
        %1532 = vmatprep.mubr.bf16.mxu0 0
        %1533 = vmatmul.mubr.bf16.gmra.mrb[0].mxu0 %v1339
        %v1534 = vpop.f32.mrb[0].mxu0
        %v1535 = vadd.f32 %v1363, %v1534
        %v1536 = vpop.f32.mrb[0].mxu0
        %v1537 = vpop.f32.mrb[0].mxu0
        %v1538 = vadd.f32 %v1363, %v1537
        %v1539 = vpop.f32.mrb[0].mxu0
        %1540 = vmatprep.mubr.bf16.mxu0 0
        %1541 = vmatmul.mubr.bf16.gmra.mrb[0].mxu0 %v1340
        %v1542 = vpop.f32.mrb[0].mxu0
        %v1543 = vadd.f32 %v1363, %v1542
        %v1544 = vpop.f32.mrb[0].mxu0
        %v1545 = vpop.f32.mrb[0].mxu0
        %v1546 = vadd.f32 %v1363, %v1545
        %v1547 = vpop.f32.mrb[0].mxu0
        %1548 = vmatprep.mubr.bf16.mxu0 0
        %1549 = vmatmul.mubr.bf16.gmra.mrb[0].mxu0 %v1341
        %v1550 = vpop.f32.mrb[0].mxu0
        %v1551 = vadd.f32 %v1363, %v1550
        %v1552 = vpop.f32.mrb[0].mxu0
        %v1553 = vpop.f32.mrb[0].mxu0
        %v1554 = vadd.f32 %v1363, %v1553
        %v1555 = vpop.f32.mrb[0].mxu0
        %1556 = vmatprep.mubr.bf16.mxu0 0
        %1557 = vmatmul.mubr.bf16.gmra.mrb[0].mxu0 %v1342
        %v1558 = vpop.f32.mrb[0].mxu0
        %v1559 = vadd.f32 %v1363, %v1558
        %v1560 = vpop.f32.mrb[0].mxu0
        %v1561 = vpop.f32.mrb[0].mxu0
        %v1562 = vadd.f32 %v1363, %v1561
        %v1563 = vpop.f32.mrb[0].mxu0
        %1564 = vmatprep.mubr.bf16.mxu0 0
        %1565 = vmatmul.mubr.bf16.gmra.mrb[0].mxu0 %v1343
        %v1566 = vpop.f32.mrb[0].mxu0
        %v1567 = vadd.f32 %v1363, %v1566
        %v1568 = vpop.f32.mrb[0].mxu0
        %v1569 = vpop.f32.mrb[0].mxu0
        %v1570 = vadd.f32 %v1363, %v1569
        %v1571 = vpop.f32.mrb[0].mxu0
        %1572 = vmatprep.mubr.bf16.mxu0 0
        %1573 = vmatmul.mubr.bf16.gmra.mrb[0].mxu0 %v1344
        %v1574 = vpop.f32.mrb[0].mxu0
        %v1575 = vadd.f32 %v1363, %v1574
        %v1576 = vpop.f32.mrb[0].mxu0
        %v1577 = vpop.f32.mrb[0].mxu0
        %v1578 = vadd.f32 %v1363, %v1577
        %v1579 = vpop.f32.mrb[0].mxu0
        %1580 = vmatprep.mubr.bf16.mxu0 0
        %1581 = vmatmul.mubr.bf16.gmra.mrb[0].mxu0 %v1345
        %v1582 = vpop.f32.mrb[0].mxu0
        %v1583 = vadd.f32 %v1363, %v1582
        %v1584 = vpop.f32.mrb[0].mxu0
        %v1585 = vpop.f32.mrb[0].mxu0
        %v1586 = vadd.f32 %v1363, %v1585
        %v1587 = vpop.f32.mrb[0].mxu0
        %1588 = vmatprep.mubr.bf16.mxu0 0
        %1589 = vmatmul.mubr.bf16.gmra.mrb[0].mxu0 %v1346
        %v1590 = vpop.f32.mrb[0].mxu0
        %v1591 = vadd.f32 %v1363, %v1590
        %v1592 = vpop.f32.mrb[0].mxu0
        %v1593 = vpop.f32.mrb[0].mxu0
        %v1594 = vadd.f32 %v1363, %v1593
        %v1595 = vpop.f32.mrb[0].mxu0
        %1596 = vmatprep.mubr.bf16.mxu0 0
        %1597 = vmatmul.mubr.bf16.gmra.mrb[0].mxu0 %v1347
        %v1598 = vpop.f32.mrb[0].mxu0
        %v1599 = vadd.f32 %v1363, %v1598
        %v1600 = vpop.f32.mrb[0].mxu0
        %v1601 = vpop.f32.mrb[0].mxu0
        %v1602 = vadd.f32 %v1363, %v1601
        %v1603 = vpop.f32.mrb[0].mxu0
        %1604 = vmatprep.mubr.bf16.mxu0 0
        %1605 = vmatmul.mubr.bf16.gmra.mrb[0].mxu0 %v1348
        %v1606 = vpop.f32.mrb[0].mxu0
        %v1607 = vadd.f32 %v1363, %v1606
        %v1608 = vpop.f32.mrb[0].mxu0
        %v1609 = vpop.f32.mrb[0].mxu0
        %v1610 = vadd.f32 %v1363, %v1609
        %v1611 = vpop.f32.mrb[0].mxu0
        %1612 = vmatprep.mubr.bf16.mxu0 0
        %1613 = vmatmul.mubr.bf16.gmra.mrb[0].mxu0 %v1349
        %v1614 = vpop.f32.mrb[0].mxu0
        %v1615 = vadd.f32 %v1363, %v1614
        %v1616 = vpop.f32.mrb[0].mxu0
        %v1617 = vpop.f32.mrb[0].mxu0
        %v1618 = vadd.f32 %v1363, %v1617
        %v1619 = vpop.f32.mrb[0].mxu0
        %1620 = vmatprep.mubr.bf16.mxu0 0
        %1621 = vmatmul.mubr.bf16.gmra.mrb[0].mxu0 %v1350
        %v1622 = vpop.f32.mrb[0].mxu0
        %v1623 = vadd.f32 %v1363, %v1622
        %v1624 = vpop.f32.mrb[0].mxu0
        %v1625 = vpop.f32.mrb[0].mxu0
        %v1626 = vadd.f32 %v1363, %v1625
        %v1627 = vpop.f32.mrb[0].mxu0
        %1628 = vmatprep.mubr.bf16.mxu0 0
        %1629 = vmatmul.mubr.bf16.gmra.mrb[0].mxu0 %v1351
        %v1630 = vpop.f32.mrb[0].mxu0
        %v1631 = vadd.f32 %v1363, %v1630
        %v1632 = vpop.f32.mrb[0].mxu0
        %v1633 = vpop.f32.mrb[0].mxu0
        %v1634 = vadd.f32 %v1363, %v1633
        %v1635 = vpop.f32.mrb[0].mxu0
        %1636 = vmatprep.mubr.bf16.mxu0 0
        %1637 = vmatmul.mubr.bf16.gmra.mrb[0].mxu0 %v1352
        %v1638 = vpop.f32.mrb[0].mxu0
        %v1639 = vadd.f32 %v1363, %v1638
        %v1640 = vpop.f32.mrb[0].mxu0
        %v1641 = vpop.f32.mrb[0].mxu0
        %v1642 = vadd.f32 %v1363, %v1641
        %v1643 = vpop.f32.mrb[0].mxu0
        %1644 = vmatprep.mubr.bf16.mxu0 0
        %1645 = vmatmul.mubr.bf16.gmra.mrb[0].mxu0 %v1353
        %v1646 = vpop.f32.mrb[0].mxu0
        %v1647 = vadd.f32 %v1363, %v1646
        %v1648 = vpop.f32.mrb[0].mxu0
        %v1649 = vpop.f32.mrb[0].mxu0
        %v1650 = vadd.f32 %v1363, %v1649
        %v1651 = vpop.f32.mrb[0].mxu0
        %1652 = vmatprep.mubr.bf16.mxu0 0
        %1653 = vmatmul.mubr.bf16.gmra.mrb[0].mxu0 %v1354
        %v1654 = vpop.f32.mrb[0].mxu0
        %v1655 = vadd.f32 %v1363, %v1654
        %v1656 = vpop.f32.mrb[0].mxu0
        %v1657 = vpop.f32.mrb[0].mxu0
        %v1658 = vadd.f32 %v1363, %v1657
        %v1659 = vpop.f32.mrb[0].mxu0
        %1660 = vmatprep.mubr.bf16.mxu0 0
        %1661 = vmatmul.mubr.bf16.gmra.mrb[0].mxu0 %v1355
        %v1662 = vpop.f32.mrb[0].mxu0
        %v1663 = vadd.f32 %v1363, %v1662
        %v1664 = vpop.f32.mrb[0].mxu0
        %v1665 = vpop.f32.mrb[0].mxu0
        %v1666 = vadd.f32 %v1363, %v1665
        %v1667 = vpop.f32.mrb[0].mxu0
        %1668 = vmatprep.mubr.bf16.mxu0 0
        %1669 = vmatmul.mubr.bf16.gmra.mrb[0].mxu0 %v1356
        %v1670 = vpop.f32.mrb[0].mxu0
        %v1671 = vadd.f32 %v1363, %v1670
        %v1672 = vpop.f32.mrb[0].mxu0
        %v1673 = vpop.f32.mrb[0].mxu0
        %v1674 = vadd.f32 %v1363, %v1673
        %v1675 = vpop.f32.mrb[0].mxu0
        %1676 = vmatprep.mubr.bf16.mxu0 0
        %1677 = vmatmul.mubr.bf16.gmra.mrb[0].mxu0 %v1357
        %v1678 = vpop.f32.mrb[0].mxu0
        %v1679 = vadd.f32 %v1363, %v1678
        %v1680 = vpop.f32.mrb[0].mxu0
        %v1681 = vpop.f32.mrb[0].mxu0
        %v1682 = vadd.f32 %v1363, %v1681
        %v1683 = vpop.f32.mrb[0].mxu0
        %1684 = vmatprep.mubr.bf16.mxu0 0
        %1685 = vmatmul.mubr.bf16.gmra.mrb[0].mxu0 %v1358
        %v1686 = vpop.f32.mrb[0].mxu0
        %v1687 = vadd.f32 %v1363, %v1686
        %v1688 = vpop.f32.mrb[0].mxu0
        %v1689 = vpop.f32.mrb[0].mxu0
        %v1690 = vadd.f32 %v1363, %v1689
        %v1691 = vpop.f32.mrb[0].mxu0
        %1692 = vmatprep.mubr.bf16.mxu0 0
        %1693 = vmatmul.mubr.bf16.gmra.mrb[0].mxu0 %v1359
        %v1694 = vpop.f32.mrb[0].mxu0
        %v1695 = vadd.f32 %v1363, %v1694
        %v1696 = vpop.f32.mrb[0].mxu0
        %v1697 = vpop.f32.mrb[0].mxu0
        %v1698 = vadd.f32 %v1363, %v1697
        %v1699 = vpop.f32.mrb[0].mxu0
        %1700 = vdwg.mxu0
        %v1701 = vmax.f32 %v1447, 0.0
        %v1702 = vmax.f32 %v1450, 0.0
        %v1703 = vmax.f32 %v1455, 0.0
        %v1704 = vmax.f32 %v1458, 0.0
        %v1705 = vmax.f32 %v1463, 0.0
        %v1706 = vmax.f32 %v1466, 0.0
        %v1707 = vmax.f32 %v1471, 0.0
        %v1708 = vmax.f32 %v1474, 0.0
        %v1709 = vmax.f32 %v1479, 0.0
        %v1710 = vmax.f32 %v1482, 0.0
        %v1711 = vmax.f32 %v1487, 0.0
        %v1712 = vmax.f32 %v1490, 0.0
        %v1713 = vmax.f32 %v1495, 0.0
        %v1714 = vmax.f32 %v1498, 0.0
        %v1715 = vmax.f32 %v1503, 0.0
        %v1716 = vmax.f32 %v1506, 0.0
        %v1717 = vmax.f32 %v1511, 0.0
        %v1718 = vmax.f32 %v1514, 0.0
        %v1719 = vmax.f32 %v1519, 0.0
        %v1720 = vmax.f32 %v1522, 0.0
        %v1721 = vmax.f32 %v1527, 0.0
        %v1722 = vmax.f32 %v1530, 0.0
        %v1723 = vmax.f32 %v1535, 0.0
        %v1724 = vmax.f32 %v1538, 0.0
        %v1725 = vmax.f32 %v1543, 0.0
        %v1726 = vmax.f32 %v1546, 0.0
        %v1727 = vmax.f32 %v1551, 0.0
        %v1728 = vmax.f32 %v1554, 0.0
        %v1729 = vmax.f32 %v1559, 0.0
        %v1730 = vmax.f32 %v1562, 0.0
        %v1731 = vmax.f32 %v1567, 0.0
        %v1732 = vmax.f32 %v1570, 0.0
        %v1733 = vmax.f32 %v1575, 0.0
        %v1734 = vmax.f32 %v1578, 0.0
        %v1735 = vmax.f32 %v1583, 0.0
        %v1736 = vmax.f32 %v1586, 0.0
        %v1737 = vmax.f32 %v1591, 0.0
        %v1738 = vmax.f32 %v1594, 0.0
        %v1739 = vmax.f32 %v1599, 0.0
        %v1740 = vmax.f32 %v1602, 0.0
        %v1741 = vmax.f32 %v1607, 0.0
        %v1742 = vmax.f32 %v1610, 0.0
        %v1743 = vmax.f32 %v1615, 0.0
        %v1744 = vmax.f32 %v1618, 0.0
        %v1745 = vmax.f32 %v1623, 0.0
        %v1746 = vmax.f32 %v1626, 0.0
        %v1747 = vmax.f32 %v1631, 0.0
        %v1748 = vmax.f32 %v1634, 0.0
        %v1749 = vmax.f32 %v1639, 0.0
        %v1750 = vmax.f32 %v1642, 0.0
        %v1751 = vmax.f32 %v1647, 0.0
        %v1752 = vmax.f32 %v1650, 0.0
        %v1753 = vmax.f32 %v1655, 0.0
        %v1754 = vmax.f32 %v1658, 0.0
        %v1755 = vmax.f32 %v1663, 0.0
        %v1756 = vmax.f32 %v1666, 0.0
        %v1757 = vmax.f32 %v1671, 0.0
        %v1758 = vmax.f32 %v1674, 0.0
        %v1759 = vmax.f32 %v1679, 0.0
        %v1760 = vmax.f32 %v1682, 0.0
        %v1761 = vmax.f32 %v1687, 0.0
        %v1762 = vmax.f32 %v1690, 0.0
        %v1763 = vmax.f32 %v1695, 0.0
        %v1764 = vmax.f32 %v1698, 0.0
        %v1765 = vld [vmem:[%s1 + $0x48] sm:$0xf]
        %v1766 = vld [vmem:[%s1 + $0x4c] sm:$0xf]
        %v1767 = vld [vmem:[%s1 + $0x50] sm:$0xf]
        %v1768 = vld [vmem:[%s1 + $0x54] sm:$0xf]
        %v1769 = vld [vmem:[%s1 + $0x58] sm:$0xf]
        %v1770 = vld [vmem:[%s1 + $0x5c] sm:$0xf]
        %v1771 = vld [vmem:[%s1 + $0x60] sm:$0xf]
        %v1772 = vld [vmem:[%s1 + $0x64] sm:$0xf]
        %v1773 = vld [vmem:[%s1 + $0x68] sm:$0xf]
        %v1774 = vld [vmem:[%s1 + $0x6c] sm:$0xf]
        %v1775 = vld [vmem:[%s1 + $0x70] sm:$0xf]
        %v1776 = vld [vmem:[%s1 + $0x74] sm:$0xf]
        %v1777 = vld [vmem:[%s1 + $0x78] sm:$0xf]
        %v1778 = vld [vmem:[%s1 + $0x7c] sm:$0xf]
        %v1779 = vld [vmem:[%s1 + $0x80] sm:$0xf]
        %v1780 = vld [vmem:[%s1 + $0x84] sm:$0xf]
        %v1781 = vpack.c.bf16 %v1702, %v1701
        %v1782 = vpack.c.bf16 %v1704, %v1703
        %v1783 = vpack.c.bf16 %v1706, %v1705
        %v1784 = vpack.c.bf16 %v1708, %v1707
        %v1785 = vpack.c.bf16 %v1710, %v1709
        %v1786 = vpack.c.bf16 %v1712, %v1711
        %v1787 = vpack.c.bf16 %v1714, %v1713
        %v1788 = vpack.c.bf16 %v1716, %v1715
        %v1789 = vpack.c.bf16 %v1718, %v1717
        %v1790 = vpack.c.bf16 %v1720, %v1719
        %v1791 = vpack.c.bf16 %v1722, %v1721
        %v1792 = vpack.c.bf16 %v1724, %v1723
        %v1793 = vpack.c.bf16 %v1726, %v1725
        %v1794 = vpack.c.bf16 %v1728, %v1727
        %v1795 = vpack.c.bf16 %v1730, %v1729
        %v1796 = vpack.c.bf16 %v1732, %v1731
        %v1797 = vpack.c.bf16 %v1734, %v1733
        %v1798 = vpack.c.bf16 %v1736, %v1735
        %v1799 = vpack.c.bf16 %v1738, %v1737
        %v1800 = vpack.c.bf16 %v1740, %v1739
        %v1801 = vpack.c.bf16 %v1742, %v1741
        %v1802 = vpack.c.bf16 %v1744, %v1743
        %v1803 = vpack.c.bf16 %v1746, %v1745
        %v1804 = vpack.c.bf16 %v1748, %v1747
        %v1805 = vpack.c.bf16 %v1750, %v1749
        %v1806 = vpack.c.bf16 %v1752, %v1751
        %v1807 = vpack.c.bf16 %v1754, %v1753
        %v1808 = vpack.c.bf16 %v1756, %v1755
        %v1809 = vpack.c.bf16 %v1758, %v1757
        %v1810 = vpack.c.bf16 %v1760, %v1759
        %v1811 = vpack.c.bf16 %v1762, %v1761
        %v1812 = vpack.c.bf16 %v1764, %v1763
        %v1813 = vlaneseq
        %v1814 = vshrl.u32 %v1813, 7
        %v1815 = vsub.s32 4, %v1814
        %v1816 = vrot.slane %v187, %v1815
        %v1833 = vunpack.c.l.b16 %v1765
        %v1834 = vunpack.c.l.b16 %v1766
        %v1835 = vunpack.c.l.b16 %v1767
        %v1836 = vunpack.c.l.b16 %v1768
        %v1837 = vunpack.c.l.b16 %v1769
        %v1838 = vunpack.c.l.b16 %v1770
        %v1839 = vunpack.c.l.b16 %v1771
        %v1840 = vunpack.c.l.b16 %v1772
        %v1841 = vunpack.c.l.b16 %v1773
        %v1842 = vunpack.c.l.b16 %v1774
        %v1843 = vunpack.c.l.b16 %v1775
        %v1844 = vunpack.c.l.b16 %v1776
        %v1845 = vunpack.c.l.b16 %v1777
        %v1846 = vunpack.c.l.b16 %v1778
        %v1847 = vunpack.c.l.b16 %v1779
        %v1848 = vunpack.c.l.b16 %v1780
        %v1849 = vpack.c.b16 %v1834, %v1833
        %v1850 = vpack.c.b16 %v1836, %v1835
        %v1851 = vpack.c.b16 %v1838, %v1837
        %v1852 = vpack.c.b16 %v1840, %v1839
        %v1853 = vpack.c.b16 %v1842, %v1841
        %v1854 = vpack.c.b16 %v1844, %v1843
        %v1855 = vpack.c.b16 %v1846, %v1845
        %v1856 = vpack.c.b16 %v1848, %v1847
        %1865 = vmatprep.subr.bf16.mxu0 0
        %1866 = vmatpush1.bf16.msra.mxu0 %v1849
        %1867 = vmatprep.subr.bf16.mxu0 0
        %1868 = vmatpush1.bf16.msra.mxu0 %v1850
        %1869 = vmatprep.subr.bf16.mxu0 0
        %1870 = vmatpush1.bf16.msra.mxu0 %v1851
        %1871 = vmatprep.subr.bf16.mxu0 0
        %1872 = vmatpush1.bf16.msra.mxu0 %v1852
        %1873 = vmatprep.subr.bf16.mxu0 0
        %1874 = vmatpush1.bf16.msra.mxu0 %v1853
        %1875 = vmatprep.subr.bf16.mxu0 0
        %1876 = vmatpush1.bf16.msra.mxu0 %v1854
        %1877 = vmatprep.subr.bf16.mxu0 0
        %1878 = vmatpush1.bf16.msra.mxu0 %v1855
        %1879 = vmatprep.subr.bf16.mxu0 0
        %1880 = vmatpush1.bf16.msra.mxu0 %v1856
        %1881 = vmatprep.subr.bf16.mxu0 0
        %1882 = vmatpush1.bf16.msra.mxu0 0
        %1883 = vmatprep.subr.bf16.mxu0 0
        %1884 = vmatpush1.bf16.msra.mxu0 0
        %1885 = vmatprep.subr.bf16.mxu0 0
        %1886 = vmatpush1.bf16.msra.mxu0 0
        %1887 = vmatprep.subr.bf16.mxu0 0
        %1888 = vmatpush1.bf16.msra.mxu0 0
        %1889 = vmatprep.subr.bf16.mxu0 0
        %1890 = vmatpush1.bf16.msra.mxu0 0
        %1891 = vmatprep.subr.bf16.mxu0 0
        %1892 = vmatpush1.bf16.msra.mxu0 0
        %1893 = vmatprep.subr.bf16.mxu0 0
        %1894 = vmatpush1.bf16.msra.mxu0 0
        %1895 = vmatprep.subr.bf16.mxu0 0
        %1896 = vmatpush1.bf16.msra.mxu0 0
        %1897 = vmatprep.mubr.bf16.mxu0 0
        %1898 = vmatmul.mubr.bf16.gmra.mrb[0].mxu0 %v1781
        %v1899 = vpop.f32.mrb[0].mxu0
        %v1900 = vadd.f32 %v1816, %v1899
        %v1901 = vpop.f32.mrb[0].mxu0
        %v1902 = vpop.f32.mrb[0].mxu0
        %v1903 = vadd.f32 %v1816, %v1902
        %v1904 = vpop.f32.mrb[0].mxu0
        %1905 = vmatprep.mubr.bf16.mxu0 0
        %1906 = vmatmul.mubr.bf16.gmra.mrb[0].mxu0 %v1782
        %v1907 = vpop.f32.mrb[0].mxu0
        %v1908 = vadd.f32 %v1816, %v1907
        %v1909 = vpop.f32.mrb[0].mxu0
        %v1910 = vpop.f32.mrb[0].mxu0
        %v1911 = vadd.f32 %v1816, %v1910
        %v1912 = vpop.f32.mrb[0].mxu0
        %1913 = vmatprep.mubr.bf16.mxu0 0
        %1914 = vmatmul.mubr.bf16.gmra.mrb[0].mxu0 %v1783
        %v1915 = vpop.f32.mrb[0].mxu0
        %v1916 = vadd.f32 %v1816, %v1915
        %v1917 = vpop.f32.mrb[0].mxu0
        %v1918 = vpop.f32.mrb[0].mxu0
        %v1919 = vadd.f32 %v1816, %v1918
        %v1920 = vpop.f32.mrb[0].mxu0
        %1921 = vmatprep.mubr.bf16.mxu0 0
        %1922 = vmatmul.mubr.bf16.gmra.mrb[0].mxu0 %v1784
        %v1923 = vpop.f32.mrb[0].mxu0
        %v1924 = vadd.f32 %v1816, %v1923
        %v1925 = vpop.f32.mrb[0].mxu0
        %v1926 = vpop.f32.mrb[0].mxu0
        %v1927 = vadd.f32 %v1816, %v1926
        %v1928 = vpop.f32.mrb[0].mxu0
        %1929 = vmatprep.mubr.bf16.mxu0 0
        %1930 = vmatmul.mubr.bf16.gmra.mrb[0].mxu0 %v1785
        %v1931 = vpop.f32.mrb[0].mxu0
        %v1932 = vadd.f32 %v1816, %v1931
        %v1933 = vpop.f32.mrb[0].mxu0
        %v1934 = vpop.f32.mrb[0].mxu0
        %v1935 = vadd.f32 %v1816, %v1934
        %v1936 = vpop.f32.mrb[0].mxu0
        %1937 = vmatprep.mubr.bf16.mxu0 0
        %1938 = vmatmul.mubr.bf16.gmra.mrb[0].mxu0 %v1786
        %v1939 = vpop.f32.mrb[0].mxu0
        %v1940 = vadd.f32 %v1816, %v1939
        %v1941 = vpop.f32.mrb[0].mxu0
        %v1942 = vpop.f32.mrb[0].mxu0
        %v1943 = vadd.f32 %v1816, %v1942
        %v1944 = vpop.f32.mrb[0].mxu0
        %1945 = vmatprep.mubr.bf16.mxu0 0
        %1946 = vmatmul.mubr.bf16.gmra.mrb[0].mxu0 %v1787
        %v1947 = vpop.f32.mrb[0].mxu0
        %v1948 = vadd.f32 %v1816, %v1947
        %v1949 = vpop.f32.mrb[0].mxu0
        %v1950 = vpop.f32.mrb[0].mxu0
        %v1951 = vadd.f32 %v1816, %v1950
        %v1952 = vpop.f32.mrb[0].mxu0
        %1953 = vmatprep.mubr.bf16.mxu0 0
        %1954 = vmatmul.mubr.bf16.gmra.mrb[0].mxu0 %v1788
        %v1955 = vpop.f32.mrb[0].mxu0
        %v1956 = vadd.f32 %v1816, %v1955
        %v1957 = vpop.f32.mrb[0].mxu0
        %v1958 = vpop.f32.mrb[0].mxu0
        %v1959 = vadd.f32 %v1816, %v1958
        %v1960 = vpop.f32.mrb[0].mxu0
        %1961 = vmatprep.mubr.bf16.mxu0 0
        %1962 = vmatmul.mubr.bf16.gmra.mrb[0].mxu0 %v1789
        %v1963 = vpop.f32.mrb[0].mxu0
        %v1964 = vadd.f32 %v1816, %v1963
        %v1965 = vpop.f32.mrb[0].mxu0
        %v1966 = vpop.f32.mrb[0].mxu0
        %v1967 = vadd.f32 %v1816, %v1966
        %v1968 = vpop.f32.mrb[0].mxu0
        %1969 = vmatprep.mubr.bf16.mxu0 0
        %1970 = vmatmul.mubr.bf16.gmra.mrb[0].mxu0 %v1790
        %v1971 = vpop.f32.mrb[0].mxu0
        %v1972 = vadd.f32 %v1816, %v1971
        %v1973 = vpop.f32.mrb[0].mxu0
        %v1974 = vpop.f32.mrb[0].mxu0
        %v1975 = vadd.f32 %v1816, %v1974
        %v1976 = vpop.f32.mrb[0].mxu0
        %1977 = vmatprep.mubr.bf16.mxu0 0
        %1978 = vmatmul.mubr.bf16.gmra.mrb[0].mxu0 %v1791
        %v1979 = vpop.f32.mrb[0].mxu0
        %v1980 = vadd.f32 %v1816, %v1979
        %v1981 = vpop.f32.mrb[0].mxu0
        %v1982 = vpop.f32.mrb[0].mxu0
        %v1983 = vadd.f32 %v1816, %v1982
        %v1984 = vpop.f32.mrb[0].mxu0
        %1985 = vmatprep.mubr.bf16.mxu0 0
        %1986 = vmatmul.mubr.bf16.gmra.mrb[0].mxu0 %v1792
        %v1987 = vpop.f32.mrb[0].mxu0
        %v1988 = vadd.f32 %v1816, %v1987
        %v1989 = vpop.f32.mrb[0].mxu0
        %v1990 = vpop.f32.mrb[0].mxu0
        %v1991 = vadd.f32 %v1816, %v1990
        %v1992 = vpop.f32.mrb[0].mxu0
        %1993 = vmatprep.mubr.bf16.mxu0 0
        %1994 = vmatmul.mubr.bf16.gmra.mrb[0].mxu0 %v1793
        %v1995 = vpop.f32.mrb[0].mxu0
        %v1996 = vadd.f32 %v1816, %v1995
        %v1997 = vpop.f32.mrb[0].mxu0
        %v1998 = vpop.f32.mrb[0].mxu0
        %v1999 = vadd.f32 %v1816, %v1998
        %v2000 = vpop.f32.mrb[0].mxu0
        %2001 = vmatprep.mubr.bf16.mxu0 0
        %2002 = vmatmul.mubr.bf16.gmra.mrb[0].mxu0 %v1794
        %v2003 = vpop.f32.mrb[0].mxu0
        %v2004 = vadd.f32 %v1816, %v2003
        %v2005 = vpop.f32.mrb[0].mxu0
        %v2006 = vpop.f32.mrb[0].mxu0
        %v2007 = vadd.f32 %v1816, %v2006
        %v2008 = vpop.f32.mrb[0].mxu0
        %2009 = vmatprep.mubr.bf16.mxu0 0
        %2010 = vmatmul.mubr.bf16.gmra.mrb[0].mxu0 %v1795
        %v2011 = vpop.f32.mrb[0].mxu0
        %v2012 = vadd.f32 %v1816, %v2011
        %v2013 = vpop.f32.mrb[0].mxu0
        %v2014 = vpop.f32.mrb[0].mxu0
        %v2015 = vadd.f32 %v1816, %v2014
        %v2016 = vpop.f32.mrb[0].mxu0
        %2017 = vmatprep.mubr.bf16.mxu0 0
        %2018 = vmatmul.mubr.bf16.gmra.mrb[0].mxu0 %v1796
        %v2019 = vpop.f32.mrb[0].mxu0
        %v2020 = vadd.f32 %v1816, %v2019
        %v2021 = vpop.f32.mrb[0].mxu0
        %v2022 = vpop.f32.mrb[0].mxu0
        %v2023 = vadd.f32 %v1816, %v2022
        %v2024 = vpop.f32.mrb[0].mxu0
        %2025 = vmatprep.mubr.bf16.mxu0 0
        %2026 = vmatmul.mubr.bf16.gmra.mrb[0].mxu0 %v1797
        %v2027 = vpop.f32.mrb[0].mxu0
        %v2028 = vadd.f32 %v1816, %v2027
        %v2029 = vpop.f32.mrb[0].mxu0
        %v2030 = vpop.f32.mrb[0].mxu0
        %v2031 = vadd.f32 %v1816, %v2030
        %v2032 = vpop.f32.mrb[0].mxu0
        %2033 = vmatprep.mubr.bf16.mxu0 0
        %2034 = vmatmul.mubr.bf16.gmra.mrb[0].mxu0 %v1798
        %v2035 = vpop.f32.mrb[0].mxu0
        %v2036 = vadd.f32 %v1816, %v2035
        %v2037 = vpop.f32.mrb[0].mxu0
        %v2038 = vpop.f32.mrb[0].mxu0
        %v2039 = vadd.f32 %v1816, %v2038
        %v2040 = vpop.f32.mrb[0].mxu0
        %2041 = vmatprep.mubr.bf16.mxu0 0
        %2042 = vmatmul.mubr.bf16.gmra.mrb[0].mxu0 %v1799
        %v2043 = vpop.f32.mrb[0].mxu0
        %v2044 = vadd.f32 %v1816, %v2043
        %v2045 = vpop.f32.mrb[0].mxu0
        %v2046 = vpop.f32.mrb[0].mxu0
        %v2047 = vadd.f32 %v1816, %v2046
        %v2048 = vpop.f32.mrb[0].mxu0
        %2049 = vmatprep.mubr.bf16.mxu0 0
        %2050 = vmatmul.mubr.bf16.gmra.mrb[0].mxu0 %v1800
        %v2051 = vpop.f32.mrb[0].mxu0
        %v2052 = vadd.f32 %v1816, %v2051
        %v2053 = vpop.f32.mrb[0].mxu0
        %v2054 = vpop.f32.mrb[0].mxu0
        %v2055 = vadd.f32 %v1816, %v2054
        %v2056 = vpop.f32.mrb[0].mxu0
        %2057 = vmatprep.mubr.bf16.mxu0 0
        %2058 = vmatmul.mubr.bf16.gmra.mrb[0].mxu0 %v1801
        %v2059 = vpop.f32.mrb[0].mxu0
        %v2060 = vadd.f32 %v1816, %v2059
        %v2061 = vpop.f32.mrb[0].mxu0
        %v2062 = vpop.f32.mrb[0].mxu0
        %v2063 = vadd.f32 %v1816, %v2062
        %v2064 = vpop.f32.mrb[0].mxu0
        %2065 = vmatprep.mubr.bf16.mxu0 0
        %2066 = vmatmul.mubr.bf16.gmra.mrb[0].mxu0 %v1802
        %v2067 = vpop.f32.mrb[0].mxu0
        %v2068 = vadd.f32 %v1816, %v2067
        %v2069 = vpop.f32.mrb[0].mxu0
        %v2070 = vpop.f32.mrb[0].mxu0
        %v2071 = vadd.f32 %v1816, %v2070
        %v2072 = vpop.f32.mrb[0].mxu0
        %2073 = vmatprep.mubr.bf16.mxu0 0
        %2074 = vmatmul.mubr.bf16.gmra.mrb[0].mxu0 %v1803
        %v2075 = vpop.f32.mrb[0].mxu0
        %v2076 = vadd.f32 %v1816, %v2075
        %v2077 = vpop.f32.mrb[0].mxu0
        %v2078 = vpop.f32.mrb[0].mxu0
        %v2079 = vadd.f32 %v1816, %v2078
        %v2080 = vpop.f32.mrb[0].mxu0
        %2081 = vmatprep.mubr.bf16.mxu0 0
        %2082 = vmatmul.mubr.bf16.gmra.mrb[0].mxu0 %v1804
        %v2083 = vpop.f32.mrb[0].mxu0
        %v2084 = vadd.f32 %v1816, %v2083
        %v2085 = vpop.f32.mrb[0].mxu0
        %v2086 = vpop.f32.mrb[0].mxu0
        %v2087 = vadd.f32 %v1816, %v2086
        %v2088 = vpop.f32.mrb[0].mxu0
        %2089 = vmatprep.mubr.bf16.mxu0 0
        %2090 = vmatmul.mubr.bf16.gmra.mrb[0].mxu0 %v1805
        %v2091 = vpop.f32.mrb[0].mxu0
        %v2092 = vadd.f32 %v1816, %v2091
        %v2093 = vpop.f32.mrb[0].mxu0
        %v2094 = vpop.f32.mrb[0].mxu0
        %v2095 = vadd.f32 %v1816, %v2094
        %v2096 = vpop.f32.mrb[0].mxu0
        %2097 = vmatprep.mubr.bf16.mxu0 0
        %2098 = vmatmul.mubr.bf16.gmra.mrb[0].mxu0 %v1806
        %v2099 = vpop.f32.mrb[0].mxu0
        %v2100 = vadd.f32 %v1816, %v2099
        %v2101 = vpop.f32.mrb[0].mxu0
        %v2102 = vpop.f32.mrb[0].mxu0
        %v2103 = vadd.f32 %v1816, %v2102
        %v2104 = vpop.f32.mrb[0].mxu0
        %2105 = vmatprep.mubr.bf16.mxu0 0
        %2106 = vmatmul.mubr.bf16.gmra.mrb[0].mxu0 %v1807
        %v2107 = vpop.f32.mrb[0].mxu0
        %v2108 = vadd.f32 %v1816, %v2107
        %v2109 = vpop.f32.mrb[0].mxu0
        %v2110 = vpop.f32.mrb[0].mxu0
        %v2111 = vadd.f32 %v1816, %v2110
        %v2112 = vpop.f32.mrb[0].mxu0
        %2113 = vmatprep.mubr.bf16.mxu0 0
        %2114 = vmatmul.mubr.bf16.gmra.mrb[0].mxu0 %v1808
        %v2115 = vpop.f32.mrb[0].mxu0
        %v2116 = vadd.f32 %v1816, %v2115
        %v2117 = vpop.f32.mrb[0].mxu0
        %v2118 = vpop.f32.mrb[0].mxu0
        %v2119 = vadd.f32 %v1816, %v2118
        %v2120 = vpop.f32.mrb[0].mxu0
        %2121 = vmatprep.mubr.bf16.mxu0 0
        %2122 = vmatmul.mubr.bf16.gmra.mrb[0].mxu0 %v1809
        %v2123 = vpop.f32.mrb[0].mxu0
        %v2124 = vadd.f32 %v1816, %v2123
        %v2125 = vpop.f32.mrb[0].mxu0
        %v2126 = vpop.f32.mrb[0].mxu0
        %v2127 = vadd.f32 %v1816, %v2126
        %v2128 = vpop.f32.mrb[0].mxu0
        %2129 = vmatprep.mubr.bf16.mxu0 0
        %2130 = vmatmul.mubr.bf16.gmra.mrb[0].mxu0 %v1810
        %v2131 = vpop.f32.mrb[0].mxu0
        %v2132 = vadd.f32 %v1816, %v2131
        %v2133 = vpop.f32.mrb[0].mxu0
        %v2134 = vpop.f32.mrb[0].mxu0
        %v2135 = vadd.f32 %v1816, %v2134
        %v2136 = vpop.f32.mrb[0].mxu0
        %2137 = vmatprep.mubr.bf16.mxu0 0
        %2138 = vmatmul.mubr.bf16.gmra.mrb[0].mxu0 %v1811
        %v2139 = vpop.f32.mrb[0].mxu0
        %v2140 = vadd.f32 %v1816, %v2139
        %v2141 = vpop.f32.mrb[0].mxu0
        %v2142 = vpop.f32.mrb[0].mxu0
        %v2143 = vadd.f32 %v1816, %v2142
        %v2144 = vpop.f32.mrb[0].mxu0
        %2145 = vmatprep.mubr.bf16.mxu0 0
        %2146 = vmatmul.mubr.bf16.gmra.mrb[0].mxu0 %v1812
        %v2147 = vpop.f32.mrb[0].mxu0
        %v2148 = vadd.f32 %v1816, %v2147
        %v2149 = vpop.f32.mrb[0].mxu0
        %v2150 = vpop.f32.mrb[0].mxu0
        %v2151 = vadd.f32 %v1816, %v2150
        %v2152 = vpop.f32.mrb[0].mxu0
        %2153 = vdwg.mxu0
        %v2154 = vlaneseq
        %v2155 = vand.u32 %v2154, 127
        %vm2156 = vcmp.lt.s32.totalorder %v2155, 24
        %v2157 = vxor.u32 %v1900, 2147483648
        %v2158 = vxor.u32 %v1903, 2147483648
        %v2159 = vxor.u32 %v1908, 2147483648
        %v2160 = vxor.u32 %v1911, 2147483648
        %v2161 = vxor.u32 %v1916, 2147483648
        %v2162 = vxor.u32 %v1919, 2147483648
        %v2163 = vxor.u32 %v1924, 2147483648
        %v2164 = vxor.u32 %v1927, 2147483648
        %v2165 = vxor.u32 %v1932, 2147483648
        %v2166 = vxor.u32 %v1935, 2147483648
        %v2167 = vxor.u32 %v1940, 2147483648
        %v2168 = vxor.u32 %v1943, 2147483648
        %v2169 = vxor.u32 %v1948, 2147483648
        %v2170 = vxor.u32 %v1951, 2147483648
        %v2171 = vxor.u32 %v1956, 2147483648
        %v2172 = vxor.u32 %v1959, 2147483648
        %v2173 = vxor.u32 %v1964, 2147483648
        %v2174 = vxor.u32 %v1967, 2147483648
        %v2175 = vxor.u32 %v1972, 2147483648
        %v2176 = vxor.u32 %v1975, 2147483648
        %v2177 = vxor.u32 %v1980, 2147483648
        %v2178 = vxor.u32 %v1983, 2147483648
        %v2179 = vxor.u32 %v1988, 2147483648
        %v2180 = vxor.u32 %v1991, 2147483648
        %v2181 = vxor.u32 %v1996, 2147483648
        %v2182 = vxor.u32 %v1999, 2147483648
        %v2183 = vxor.u32 %v2004, 2147483648
        %v2184 = vxor.u32 %v2007, 2147483648
        %v2185 = vxor.u32 %v2012, 2147483648
        %v2186 = vxor.u32 %v2015, 2147483648
        %v2187 = vxor.u32 %v2020, 2147483648
        %v2188 = vxor.u32 %v2023, 2147483648
        %v2189 = vxor.u32 %v2028, 2147483648
        %v2190 = vxor.u32 %v2031, 2147483648
        %v2191 = vxor.u32 %v2036, 2147483648
        %v2192 = vxor.u32 %v2039, 2147483648
        %v2193 = vxor.u32 %v2044, 2147483648
        %v2194 = vxor.u32 %v2047, 2147483648
        %v2195 = vxor.u32 %v2052, 2147483648
        %v2196 = vxor.u32 %v2055, 2147483648
        %v2197 = vxor.u32 %v2060, 2147483648
        %v2198 = vxor.u32 %v2063, 2147483648
        %v2199 = vxor.u32 %v2068, 2147483648
        %v2200 = vxor.u32 %v2071, 2147483648
        %v2201 = vxor.u32 %v2076, 2147483648
        %v2202 = vxor.u32 %v2079, 2147483648
        %v2203 = vxor.u32 %v2084, 2147483648
        %v2204 = vxor.u32 %v2087, 2147483648
        %v2205 = vxor.u32 %v2092, 2147483648
        %v2206 = vxor.u32 %v2095, 2147483648
        %v2207 = vxor.u32 %v2100, 2147483648
        %v2208 = vxor.u32 %v2103, 2147483648
        %v2209 = vxor.u32 %v2108, 2147483648
        %v2210 = vxor.u32 %v2111, 2147483648
        %v2211 = vxor.u32 %v2116, 2147483648
        %v2212 = vxor.u32 %v2119, 2147483648
        %v2213 = vxor.u32 %v2124, 2147483648
        %v2214 = vxor.u32 %v2127, 2147483648
        %v2215 = vxor.u32 %v2132, 2147483648
        %v2216 = vxor.u32 %v2135, 2147483648
        %v2217 = vxor.u32 %v2140, 2147483648
        %v2218 = vxor.u32 %v2143, 2147483648
        %v2219 = vxor.u32 %v2148, 2147483648
        %v2220 = vxor.u32 %v2151, 2147483648
        %v2221 = vmul.f32 %v2157, 1.442695
        %v2222 = vpow.pop %v2221
        %v2223 = vmul.f32 %v2158, 1.442695
        %v2224 = vpow.pop %v2223
        %v2225 = vmul.f32 %v2159, 1.442695
        %v2226 = vpow.pop %v2225
        %v2227 = vmul.f32 %v2160, 1.442695
        %v2228 = vpow.pop %v2227
        %v2229 = vmul.f32 %v2161, 1.442695
        %v2230 = vpow.pop %v2229
        %v2231 = vmul.f32 %v2162, 1.442695
        %v2232 = vpow.pop %v2231
        %v2233 = vmul.f32 %v2163, 1.442695
        %v2234 = vpow.pop %v2233
        %v2235 = vmul.f32 %v2164, 1.442695
        %v2236 = vpow.pop %v2235
        %v2237 = vmul.f32 %v2165, 1.442695
        %v2238 = vpow.pop %v2237
        %v2239 = vmul.f32 %v2166, 1.442695
        %v2240 = vpow.pop %v2239
        %v2241 = vmul.f32 %v2167, 1.442695
        %v2242 = vpow.pop %v2241
        %v2243 = vmul.f32 %v2168, 1.442695
        %v2244 = vpow.pop %v2243
        %v2245 = vmul.f32 %v2169, 1.442695
        %v2246 = vpow.pop %v2245
        %v2247 = vmul.f32 %v2170, 1.442695
        %v2248 = vpow.pop %v2247
        %v2249 = vmul.f32 %v2171, 1.442695
        %v2250 = vpow.pop %v2249
        %v2251 = vmul.f32 %v2172, 1.442695
        %v2252 = vpow.pop %v2251
        %v2253 = vmul.f32 %v2173, 1.442695
        %v2254 = vpow.pop %v2253
        %v2255 = vmul.f32 %v2174, 1.442695
        %v2256 = vpow.pop %v2255
        %v2257 = vmul.f32 %v2175, 1.442695
        %v2258 = vpow.pop %v2257
        %v2259 = vmul.f32 %v2176, 1.442695
        %v2260 = vpow.pop %v2259
        %v2261 = vmul.f32 %v2177, 1.442695
        %v2262 = vpow.pop %v2261
        %v2263 = vmul.f32 %v2178, 1.442695
        %v2264 = vpow.pop %v2263
        %v2265 = vmul.f32 %v2179, 1.442695
        %v2266 = vpow.pop %v2265
        %v2267 = vmul.f32 %v2180, 1.442695
        %v2268 = vpow.pop %v2267
        %v2269 = vmul.f32 %v2181, 1.442695
        %v2270 = vpow.pop %v2269
        %v2271 = vmul.f32 %v2182, 1.442695
        %v2272 = vpow.pop %v2271
        %v2273 = vmul.f32 %v2183, 1.442695
        %v2274 = vpow.pop %v2273
        %v2275 = vmul.f32 %v2184, 1.442695
        %v2276 = vpow.pop %v2275
        %v2277 = vmul.f32 %v2185, 1.442695
        %v2278 = vpow.pop %v2277
        %v2279 = vmul.f32 %v2186, 1.442695
        %v2280 = vpow.pop %v2279
        %v2281 = vmul.f32 %v2187, 1.442695
        %v2282 = vpow.pop %v2281
        %v2283 = vmul.f32 %v2188, 1.442695
        %v2284 = vpow.pop %v2283
        %v2285 = vmul.f32 %v2189, 1.442695
        %v2286 = vpow.pop %v2285
        %v2287 = vmul.f32 %v2190, 1.442695
        %v2288 = vpow.pop %v2287
        %v2289 = vmul.f32 %v2191, 1.442695
        %v2290 = vpow.pop %v2289
        %v2291 = vmul.f32 %v2192, 1.442695
        %v2292 = vpow.pop %v2291
        %v2293 = vmul.f32 %v2193, 1.442695
        %v2294 = vpow.pop %v2293
        %v2295 = vmul.f32 %v2194, 1.442695
        %v2296 = vpow.pop %v2295
        %v2297 = vmul.f32 %v2195, 1.442695
        %v2298 = vpow.pop %v2297
        %v2299 = vmul.f32 %v2196, 1.442695
        %v2300 = vpow.pop %v2299
        %v2301 = vmul.f32 %v2197, 1.442695
        %v2302 = vpow.pop %v2301
        %v2303 = vmul.f32 %v2198, 1.442695
        %v2304 = vpow.pop %v2303
        %v2305 = vmul.f32 %v2199, 1.442695
        %v2306 = vpow.pop %v2305
        %v2307 = vmul.f32 %v2200, 1.442695
        %v2308 = vpow.pop %v2307
        %v2309 = vmul.f32 %v2201, 1.442695
        %v2310 = vpow.pop %v2309
        %v2311 = vmul.f32 %v2202, 1.442695
        %v2312 = vpow.pop %v2311
        %v2313 = vmul.f32 %v2203, 1.442695
        %v2314 = vpow.pop %v2313
        %v2315 = vmul.f32 %v2204, 1.442695
        %v2316 = vpow.pop %v2315
        %v2317 = vmul.f32 %v2205, 1.442695
        %v2318 = vpow.pop %v2317
        %v2319 = vmul.f32 %v2206, 1.442695
        %v2320 = vpow.pop %v2319
        %v2321 = vmul.f32 %v2207, 1.442695
        %v2322 = vpow.pop %v2321
        %v2323 = vmul.f32 %v2208, 1.442695
        %v2324 = vpow.pop %v2323
        %v2325 = vmul.f32 %v2209, 1.442695
        %v2326 = vpow.pop %v2325
        %v2327 = vmul.f32 %v2210, 1.442695
        %v2328 = vpow.pop %v2327
        %v2329 = vmul.f32 %v2211, 1.442695
        %v2330 = vpow.pop %v2329
        %v2331 = vmul.f32 %v2212, 1.442695
        %v2332 = vpow.pop %v2331
        %v2333 = vmul.f32 %v2213, 1.442695
        %v2334 = vpow.pop %v2333
        %v2335 = vmul.f32 %v2214, 1.442695
        %v2336 = vpow.pop %v2335
        %v2337 = vmul.f32 %v2215, 1.442695
        %v2338 = vpow.pop %v2337
        %v2339 = vmul.f32 %v2216, 1.442695
        %v2340 = vpow.pop %v2339
        %v2341 = vmul.f32 %v2217, 1.442695
        %v2342 = vpow.pop %v2341
        %v2343 = vmul.f32 %v2218, 1.442695
        %v2344 = vpow.pop %v2343
        %v2345 = vmul.f32 %v2219, 1.442695
        %v2346 = vpow.pop %v2345
        %v2347 = vmul.f32 %v2220, 1.442695
        %v2348 = vpow.pop %v2347
        %v2349 = vadd.f32 %v2222, 1.0
        %v2350 = vadd.f32 %v2224, 1.0
        %v2351 = vadd.f32 %v2226, 1.0
        %v2352 = vadd.f32 %v2228, 1.0
        %v2353 = vadd.f32 %v2230, 1.0
        %v2354 = vadd.f32 %v2232, 1.0
        %v2355 = vadd.f32 %v2234, 1.0
        %v2356 = vadd.f32 %v2236, 1.0
        %v2357 = vadd.f32 %v2238, 1.0
        %v2358 = vadd.f32 %v2240, 1.0
        %v2359 = vadd.f32 %v2242, 1.0
        %v2360 = vadd.f32 %v2244, 1.0
        %v2361 = vadd.f32 %v2246, 1.0
        %v2362 = vadd.f32 %v2248, 1.0
        %v2363 = vadd.f32 %v2250, 1.0
        %v2364 = vadd.f32 %v2252, 1.0
        %v2365 = vadd.f32 %v2254, 1.0
        %v2366 = vadd.f32 %v2256, 1.0
        %v2367 = vadd.f32 %v2258, 1.0
        %v2368 = vadd.f32 %v2260, 1.0
        %v2369 = vadd.f32 %v2262, 1.0
        %v2370 = vadd.f32 %v2264, 1.0
        %v2371 = vadd.f32 %v2266, 1.0
        %v2372 = vadd.f32 %v2268, 1.0
        %v2373 = vadd.f32 %v2270, 1.0
        %v2374 = vadd.f32 %v2272, 1.0
        %v2375 = vadd.f32 %v2274, 1.0
        %v2376 = vadd.f32 %v2276, 1.0
        %v2377 = vadd.f32 %v2278, 1.0
        %v2378 = vadd.f32 %v2280, 1.0
        %v2379 = vadd.f32 %v2282, 1.0
        %v2380 = vadd.f32 %v2284, 1.0
        %v2381 = vadd.f32 %v2286, 1.0
        %v2382 = vadd.f32 %v2288, 1.0
        %v2383 = vadd.f32 %v2290, 1.0
        %v2384 = vadd.f32 %v2292, 1.0
        %v2385 = vadd.f32 %v2294, 1.0
        %v2386 = vadd.f32 %v2296, 1.0
        %v2387 = vadd.f32 %v2298, 1.0
        %v2388 = vadd.f32 %v2300, 1.0
        %v2389 = vadd.f32 %v2302, 1.0
        %v2390 = vadd.f32 %v2304, 1.0
        %v2391 = vadd.f32 %v2306, 1.0
        %v2392 = vadd.f32 %v2308, 1.0
        %v2393 = vadd.f32 %v2310, 1.0
        %v2394 = vadd.f32 %v2312, 1.0
        %v2395 = vadd.f32 %v2314, 1.0
        %v2396 = vadd.f32 %v2316, 1.0
        %v2397 = vadd.f32 %v2318, 1.0
        %v2398 = vadd.f32 %v2320, 1.0
        %v2399 = vadd.f32 %v2322, 1.0
        %v2400 = vadd.f32 %v2324, 1.0
        %v2401 = vadd.f32 %v2326, 1.0
        %v2402 = vadd.f32 %v2328, 1.0
        %v2403 = vadd.f32 %v2330, 1.0
        %v2404 = vadd.f32 %v2332, 1.0
        %v2405 = vadd.f32 %v2334, 1.0
        %v2406 = vadd.f32 %v2336, 1.0
        %v2407 = vadd.f32 %v2338, 1.0
        %v2408 = vadd.f32 %v2340, 1.0
        %v2409 = vadd.f32 %v2342, 1.0
        %v2410 = vadd.f32 %v2344, 1.0
        %v2411 = vadd.f32 %v2346, 1.0
        %v2412 = vadd.f32 %v2348, 1.0
        %v2413 = vrcp.pop %v2349
        %v2414 = vmul.f32 1.0, %v2413
        %v2415 = vrcp.pop %v2350
        %v2416 = vmul.f32 1.0, %v2415
        %v2417 = vrcp.pop %v2351
        %v2418 = vmul.f32 1.0, %v2417
        %v2419 = vrcp.pop %v2352
        %v2420 = vmul.f32 1.0, %v2419
        %v2421 = vrcp.pop %v2353
        %v2422 = vmul.f32 1.0, %v2421
        %v2423 = vrcp.pop %v2354
        %v2424 = vmul.f32 1.0, %v2423
        %v2425 = vrcp.pop %v2355
        %v2426 = vmul.f32 1.0, %v2425
        %v2427 = vrcp.pop %v2356
        %v2428 = vmul.f32 1.0, %v2427
        %v2429 = vrcp.pop %v2357
        %v2430 = vmul.f32 1.0, %v2429
        %v2431 = vrcp.pop %v2358
        %v2432 = vmul.f32 1.0, %v2431
        %v2433 = vrcp.pop %v2359
        %v2434 = vmul.f32 1.0, %v2433
        %v2435 = vrcp.pop %v2360
        %v2436 = vmul.f32 1.0, %v2435
        %v2437 = vrcp.pop %v2361
        %v2438 = vmul.f32 1.0, %v2437
        %v2439 = vrcp.pop %v2362
        %v2440 = vmul.f32 1.0, %v2439
        %v2441 = vrcp.pop %v2363
        %v2442 = vmul.f32 1.0, %v2441
        %v2443 = vrcp.pop %v2364
        %v2444 = vmul.f32 1.0, %v2443
        %v2445 = vrcp.pop %v2365
        %v2446 = vmul.f32 1.0, %v2445
        %v2447 = vrcp.pop %v2366
        %v2448 = vmul.f32 1.0, %v2447
        %v2449 = vrcp.pop %v2367
        %v2450 = vmul.f32 1.0, %v2449
        %v2451 = vrcp.pop %v2368
        %v2452 = vmul.f32 1.0, %v2451
        %v2453 = vrcp.pop %v2369
        %v2454 = vmul.f32 1.0, %v2453
        %v2455 = vrcp.pop %v2370
        %v2456 = vmul.f32 1.0, %v2455
        %v2457 = vrcp.pop %v2371
        %v2458 = vmul.f32 1.0, %v2457
        %v2459 = vrcp.pop %v2372
        %v2460 = vmul.f32 1.0, %v2459
        %v2461 = vrcp.pop %v2373
        %v2462 = vmul.f32 1.0, %v2461
        %v2463 = vrcp.pop %v2374
        %v2464 = vmul.f32 1.0, %v2463
        %v2465 = vrcp.pop %v2375
        %v2466 = vmul.f32 1.0, %v2465
        %v2467 = vrcp.pop %v2376
        %v2468 = vmul.f32 1.0, %v2467
        %v2469 = vrcp.pop %v2377
        %v2470 = vmul.f32 1.0, %v2469
        %v2471 = vrcp.pop %v2378
        %v2472 = vmul.f32 1.0, %v2471
        %v2473 = vrcp.pop %v2379
        %v2474 = vmul.f32 1.0, %v2473
        %v2475 = vrcp.pop %v2380
        %v2476 = vmul.f32 1.0, %v2475
        %v2477 = vrcp.pop %v2381
        %v2478 = vmul.f32 1.0, %v2477
        %v2479 = vrcp.pop %v2382
        %v2480 = vmul.f32 1.0, %v2479
        %v2481 = vrcp.pop %v2383
        %v2482 = vmul.f32 1.0, %v2481
        %v2483 = vrcp.pop %v2384
        %v2484 = vmul.f32 1.0, %v2483
        %v2485 = vrcp.pop %v2385
        %v2486 = vmul.f32 1.0, %v2485
        %v2487 = vrcp.pop %v2386
        %v2488 = vmul.f32 1.0, %v2487
        %v2489 = vrcp.pop %v2387
        %v2490 = vmul.f32 1.0, %v2489
        %v2491 = vrcp.pop %v2388
        %v2492 = vmul.f32 1.0, %v2491
        %v2493 = vrcp.pop %v2389
        %v2494 = vmul.f32 1.0, %v2493
        %v2495 = vrcp.pop %v2390
        %v2496 = vmul.f32 1.0, %v2495
        %v2497 = vrcp.pop %v2391
        %v2498 = vmul.f32 1.0, %v2497
        %v2499 = vrcp.pop %v2392
        %v2500 = vmul.f32 1.0, %v2499
        %v2501 = vrcp.pop %v2393
        %v2502 = vmul.f32 1.0, %v2501
        %v2503 = vrcp.pop %v2394
        %v2504 = vmul.f32 1.0, %v2503
        %v2505 = vrcp.pop %v2395
        %v2506 = vmul.f32 1.0, %v2505
        %v2507 = vrcp.pop %v2396
        %v2508 = vmul.f32 1.0, %v2507
        %v2509 = vrcp.pop %v2397
        %v2510 = vmul.f32 1.0, %v2509
        %v2511 = vrcp.pop %v2398
        %v2512 = vmul.f32 1.0, %v2511
        %v2513 = vrcp.pop %v2399
        %v2514 = vmul.f32 1.0, %v2513
        %v2515 = vrcp.pop %v2400
        %v2516 = vmul.f32 1.0, %v2515
        %v2517 = vrcp.pop %v2401
        %v2518 = vmul.f32 1.0, %v2517
        %v2519 = vrcp.pop %v2402
        %v2520 = vmul.f32 1.0, %v2519
        %v2521 = vrcp.pop %v2403
        %v2522 = vmul.f32 1.0, %v2521
        %v2523 = vrcp.pop %v2404
        %v2524 = vmul.f32 1.0, %v2523
        %v2525 = vrcp.pop %v2405
        %v2526 = vmul.f32 1.0, %v2525
        %v2527 = vrcp.pop %v2406
        %v2528 = vmul.f32 1.0, %v2527
        %v2529 = vrcp.pop %v2407
        %v2530 = vmul.f32 1.0, %v2529
        %v2531 = vrcp.pop %v2408
        %v2532 = vmul.f32 1.0, %v2531
        %v2533 = vrcp.pop %v2409
        %v2534 = vmul.f32 1.0, %v2533
        %v2535 = vrcp.pop %v2410
        %v2536 = vmul.f32 1.0, %v2535
        %v2537 = vrcp.pop %v2411
        %v2538 = vmul.f32 1.0, %v2537
        %v2539 = vrcp.pop %v2412
        %v2540 = vmul.f32 1.0, %v2539
        %v2541 = vsel %vm2156, %v2414, %v1900
        %v2542 = vsel %vm2156, %v2416, %v1903
        %v2543 = vsel %vm2156, %v2418, %v1908
        %v2544 = vsel %vm2156, %v2420, %v1911
        %v2545 = vsel %vm2156, %v2422, %v1916
        %v2546 = vsel %vm2156, %v2424, %v1919
        %v2547 = vsel %vm2156, %v2426, %v1924
        %v2548 = vsel %vm2156, %v2428, %v1927
        %v2549 = vsel %vm2156, %v2430, %v1932
        %v2550 = vsel %vm2156, %v2432, %v1935
        %v2551 = vsel %vm2156, %v2434, %v1940
        %v2552 = vsel %vm2156, %v2436, %v1943
        %v2553 = vsel %vm2156, %v2438, %v1948
        %v2554 = vsel %vm2156, %v2440, %v1951
        %v2555 = vsel %vm2156, %v2442, %v1956
        %v2556 = vsel %vm2156, %v2444, %v1959
        %v2557 = vsel %vm2156, %v2446, %v1964
        %v2558 = vsel %vm2156, %v2448, %v1967
        %v2559 = vsel %vm2156, %v2450, %v1972
        %v2560 = vsel %vm2156, %v2452, %v1975
        %v2561 = vsel %vm2156, %v2454, %v1980
        %v2562 = vsel %vm2156, %v2456, %v1983
        %v2563 = vsel %vm2156, %v2458, %v1988
        %v2564 = vsel %vm2156, %v2460, %v1991
        %v2565 = vsel %vm2156, %v2462, %v1996
        %v2566 = vsel %vm2156, %v2464, %v1999
        %v2567 = vsel %vm2156, %v2466, %v2004
        %v2568 = vsel %vm2156, %v2468, %v2007
        %v2569 = vsel %vm2156, %v2470, %v2012
        %v2570 = vsel %vm2156, %v2472, %v2015
        %v2571 = vsel %vm2156, %v2474, %v2020
        %v2572 = vsel %vm2156, %v2476, %v2023
        %v2573 = vsel %vm2156, %v2478, %v2028
        %v2574 = vsel %vm2156, %v2480, %v2031
        %v2575 = vsel %vm2156, %v2482, %v2036
        %v2576 = vsel %vm2156, %v2484, %v2039
        %v2577 = vsel %vm2156, %v2486, %v2044
        %v2578 = vsel %vm2156, %v2488, %v2047
        %v2579 = vsel %vm2156, %v2490, %v2052
        %v2580 = vsel %vm2156, %v2492, %v2055
        %v2581 = vsel %vm2156, %v2494, %v2060
        %v2582 = vsel %vm2156, %v2496, %v2063
        %v2583 = vsel %vm2156, %v2498, %v2068
        %v2584 = vsel %vm2156, %v2500, %v2071
        %v2585 = vsel %vm2156, %v2502, %v2076
        %v2586 = vsel %vm2156, %v2504, %v2079
        %v2587 = vsel %vm2156, %v2506, %v2084
        %v2588 = vsel %vm2156, %v2508, %v2087
        %v2589 = vsel %vm2156, %v2510, %v2092
        %v2590 = vsel %vm2156, %v2512, %v2095
        %v2591 = vsel %vm2156, %v2514, %v2100
        %v2592 = vsel %vm2156, %v2516, %v2103
        %v2593 = vsel %vm2156, %v2518, %v2108
        %v2594 = vsel %vm2156, %v2520, %v2111
        %v2595 = vsel %vm2156, %v2522, %v2116
        %v2596 = vsel %vm2156, %v2524, %v2119
        %v2597 = vsel %vm2156, %v2526, %v2124
        %v2598 = vsel %vm2156, %v2528, %v2127
        %v2599 = vsel %vm2156, %v2530, %v2132
        %v2600 = vsel %vm2156, %v2532, %v2135
        %v2601 = vsel %vm2156, %v2534, %v2140
        %v2602 = vsel %vm2156, %v2536, %v2143
        %v2603 = vsel %vm2156, %v2538, %v2148
        %v2604 = vsel %vm2156, %v2540, %v2151
        %2605 = vst [vmem:[%s184] sm:$0xff] %v2541
        %2606 = vst [vmem:[%s184 + $0x8] sm:$0xff] %v2542
        %2607 = vst [vmem:[%s184 + $0x10] sm:$0xff] %v2543
        %2608 = vst [vmem:[%s184 + $0x18] sm:$0xff] %v2544
        %2609 = vst [vmem:[%s184 + $0x20] sm:$0xff] %v2545
        %2610 = vst [vmem:[%s184 + $0x28] sm:$0xff] %v2546
        %2611 = vst [vmem:[%s184 + $0x30] sm:$0xff] %v2547
        %2612 = vst [vmem:[%s184 + $0x38] sm:$0xff] %v2548
        %2613 = vst [vmem:[%s184 + $0x40] sm:$0xff] %v2549
        %2614 = vst [vmem:[%s184 + $0x48] sm:$0xff] %v2550
        %2615 = vst [vmem:[%s184 + $0x50] sm:$0xff] %v2551
        %2616 = vst [vmem:[%s184 + $0x58] sm:$0xff] %v2552
        %2617 = vst [vmem:[%s184 + $0x60] sm:$0xff] %v2553
        %2618 = vst [vmem:[%s184 + $0x68] sm:$0xff] %v2554
        %2619 = vst [vmem:[%s184 + $0x70] sm:$0xff] %v2555
        %2620 = vst [vmem:[%s184 + $0x78] sm:$0xff] %v2556
        %2621 = vst [vmem:[%s184 + $0x80] sm:$0xff] %v2557
        %2622 = vst [vmem:[%s184 + $0x88] sm:$0xff] %v2558
        %2623 = vst [vmem:[%s184 + $0x90] sm:$0xff] %v2559
        %2624 = vst [vmem:[%s184 + $0x98] sm:$0xff] %v2560
        %2625 = vst [vmem:[%s184 + $0xa0] sm:$0xff] %v2561
        %2626 = vst [vmem:[%s184 + $0xa8] sm:$0xff] %v2562
        %2627 = vst [vmem:[%s184 + $0xb0] sm:$0xff] %v2563
        %2628 = vst [vmem:[%s184 + $0xb8] sm:$0xff] %v2564
        %2629 = vst [vmem:[%s184 + $0xc0] sm:$0xff] %v2565
        %2630 = vst [vmem:[%s184 + $0xc8] sm:$0xff] %v2566
        %2631 = vst [vmem:[%s184 + $0xd0] sm:$0xff] %v2567
        %2632 = vst [vmem:[%s184 + $0xd8] sm:$0xff] %v2568
        %2633 = vst [vmem:[%s184 + $0xe0] sm:$0xff] %v2569
        %2634 = vst [vmem:[%s184 + $0xe8] sm:$0xff] %v2570
        %2635 = vst [vmem:[%s184 + $0xf0] sm:$0xff] %v2571
        %2636 = vst [vmem:[%s184 + $0xf8] sm:$0xff] %v2572
        %2637 = vst [vmem:[%s184 + $0x100] sm:$0xff] %v2573
        %2638 = vst [vmem:[%s184 + $0x108] sm:$0xff] %v2574
        %2639 = vst [vmem:[%s184 + $0x110] sm:$0xff] %v2575
        %2640 = vst [vmem:[%s184 + $0x118] sm:$0xff] %v2576
        %2641 = vst [vmem:[%s184 + $0x120] sm:$0xff] %v2577
        %2642 = vst [vmem:[%s184 + $0x128] sm:$0xff] %v2578
        %2643 = vst [vmem:[%s184 + $0x130] sm:$0xff] %v2579
        %2644 = vst [vmem:[%s184 + $0x138] sm:$0xff] %v2580
        %2645 = vst [vmem:[%s184 + $0x140] sm:$0xff] %v2581
        %2646 = vst [vmem:[%s184 + $0x148] sm:$0xff] %v2582
        %2647 = vst [vmem:[%s184 + $0x150] sm:$0xff] %v2583
        %2648 = vst [vmem:[%s184 + $0x158] sm:$0xff] %v2584
        %2649 = vst [vmem:[%s184 + $0x160] sm:$0xff] %v2585
        %2650 = vst [vmem:[%s184 + $0x168] sm:$0xff] %v2586
        %2651 = vst [vmem:[%s184 + $0x170] sm:$0xff] %v2587
        %2652 = vst [vmem:[%s184 + $0x178] sm:$0xff] %v2588
        %2653 = vst [vmem:[%s184 + $0x180] sm:$0xff] %v2589
        %2654 = vst [vmem:[%s184 + $0x188] sm:$0xff] %v2590
        %2655 = vst [vmem:[%s184 + $0x190] sm:$0xff] %v2591
        %2656 = vst [vmem:[%s184 + $0x198] sm:$0xff] %v2592
        %2657 = vst [vmem:[%s184 + $0x1a0] sm:$0xff] %v2593
        %2658 = vst [vmem:[%s184 + $0x1a8] sm:$0xff] %v2594
        %2659 = vst [vmem:[%s184 + $0x1b0] sm:$0xff] %v2595
        %2660 = vst [vmem:[%s184 + $0x1b8] sm:$0xff] %v2596
        %2661 = vst [vmem:[%s184 + $0x1c0] sm:$0xff] %v2597
        %2662 = vst [vmem:[%s184 + $0x1c8] sm:$0xff] %v2598
        %2663 = vst [vmem:[%s184 + $0x1d0] sm:$0xff] %v2599
        %2664 = vst [vmem:[%s184 + $0x1d8] sm:$0xff] %v2600
        %2665 = vst [vmem:[%s184 + $0x1e0] sm:$0xff] %v2601
        %2666 = vst [vmem:[%s184 + $0x1e8] sm:$0xff] %v2602
        %2667 = vst [vmem:[%s184 + $0x1f0] sm:$0xff] %v2603
        %2668 = vst [vmem:[%s184 + $0x1f8] sm:$0xff] %v2604
      $region44: #{actor_forward.1} parent=31 // pred_fallthru
        _
      %s2669 = smul.u32 64, %s19
      %p2670 = scmp.lt.s32.totalorder %s2669, 127
      %s2671 = scalar_select %p2670, %s2669, 127
      %s2672 = smul.addr %s2671, 8
      %s2673 = scalar_lea.vmem %s3, %s2672
      // Predicated region
      $region45: #{actor_forward.1} parent=31 // pred_check
        %p2674 = pneg %p112
      $region46: #{actor_forward.1} parent=31 // pred_check_branch
        %2676 = sbr.rel (%p2674) target = $region48
      $region47: #{actor_forward.1} parent=31 // pred_region
        %s2677 = smul.u32 64, %s19
      $region48: #{actor_forward.1} parent=31 // pred_fallthru
        _
    $region32: #{actor_forward.1} parent=5 // pred_fallthru
      _
    %p2678 = scmp.le.s32.totalorder 2, %s9
    // Predicated region
    $region49: #{actor_forward.1} parent=5 // pred_check
      %p2679 = pneg %p2678
    $region50: #{actor_forward.1} parent=5 // pred_check_branch
      %2681 = sbr.rel (%p2679) target = $region52
    $region51: #{actor_forward.1} parent=5 // pred_region
      %s2682 = ssub.s32 %s9, 2
      // Predicated region
      $region53: #{actor_forward.1} parent=51 // pred_check
        %p2683 = pneg %p118
      $region54: #{actor_forward.1} parent=51 // pred_check_branch
        %2685 = sbr.rel (%p2683) target = $region56
      $region55: #{actor_forward.1} parent=51 // pred_region
        %s2686 = smul.u32 64, %s21
        %p2687 = scmp.lt.s32.totalorder %s2686, 127
        %s2688 = scalar_select %p2687, %s2686, 127
        %s2689 = smul.addr %s2688, 8
        %s2690 = scalar_lea.vmem %s3, %s2689
      $region56: #{actor_forward.1} parent=51 // pred_fallthru
        _
    $region52: #{actor_forward.1} parent=5 // pred_fallthru
      _
  $region6: #{actor_forward.1} parent=0 // loop_footer
    %s13 = sadd.s32 1, %s9
  $region7: #{actor_forward.1} parent=0 // loop_footer_branch
    %8 = sbr.rel target = $region3
  $region8: #{actor_forward.1} parent=0 // loop_exit
    _

</llo_original>
